<compile_context>
chip_gen: v7x
topology: tpu7x:2x2x1
jax: 0.10.0
libtpu: 0.0.40
codegen_flags: <defaults>
</compile_context>

<pallas_src>
import math

import jax
import jax.numpy as jnp
from jax.experimental import pallas as pl
from jax.experimental.pallas import tpu as pltpu


def _causal_out_len(T: int, K: int, S: int) -> int:
    """Output length of CausalConv1d: Conv1d(pad=K-1 both sides) then trim."""
    conv_len = (T + 2 * (K - 1) - (K - 1) - 1) // S + 1   # = (T + K - 2)//S + 1
    last_n = (2 * (K - 1) - K) // S + 1
    return conv_len - last_n if last_n > 0 else conv_len


# --------------------------- host-side constants -----------------------------
def _tap_select(T_in: int, L: int, K: int, S: int) -> jnp.ndarray:
    """(K, L, T_in) 0/1 matrices: sel[m] @ x gathers rows j*S-(K-1)+m.

    Out-of-range (negative) source rows select nothing -> causal zero padding.
    """
    j = jnp.arange(L)[:, None]
    t = jnp.arange(T_in)[None, :]
    return jnp.stack([(t == (j * S - (K - 1) + m)).astype(jnp.float32)
                      for m in range(K)], axis=0)


def _blockdiag_weight(w: jnp.ndarray, BB: int) -> jnp.ndarray:
    """(K, Ci, Co) -> (K, BB*Ci, BB*Co), block-diagonal over the batch lanes."""
    K, Ci, Co = w.shape
    eye = jnp.eye(BB, dtype=w.dtype)
    return jnp.einsum('kio,bd->kbido', w, eye).reshape(K, BB * Ci, BB * Co)


def _group_indicator(W: int, Cg: int) -> jnp.ndarray:
    """(W, W) 0/1 matrix: 1 iff two packed lanes share a (batch, group)."""
    idx = jnp.arange(W)
    return (idx[:, None] // Cg == idx[None, :] // Cg).astype(jnp.float32)


# ------------------------------- kernel body ---------------------------------
def _conv_gn_mish(x, sel_ref, w_ref, grp_ref, bias, gamma, beta, K, L, Cg):
    """One Conv1dBlock on the lane-packed layout.

    x:       (T_in, BB*C_in)  f32 value (time on sublanes, batch*chan on lanes)
    sel_ref: (K, L, T_in)     per-tap time-selection (causal pad + stride)
    w_ref:   (K, BB*C_in, BB*C_out) block-diagonal conv weights
    grp_ref: (BB*C_out, BB*C_out)   GroupNorm group indicator
    bias/gamma/beta: (1, BB*C_out)
    returns  (L, BB*C_out) f32
    """
    Wout = w_ref.shape[2]
    grp = grp_ref[...]

    # causal strided conv: acc[j] = sum_m x[j*S-(K-1)+m] @ W[m]  (MXU matmuls)
    acc = jnp.zeros((L, Wout), jnp.float32)
    for m in range(K):                                    # static unroll (K = 5 or 3)
        xm = jnp.dot(sel_ref[m], x, preferred_element_type=jnp.float32)
        acc = acc + jnp.dot(xm, w_ref[m], preferred_element_type=jnp.float32)
    acc = acc + bias

    # GroupNorm over (time, channels-in-group), biased variance, eps=1e-5
    inv_n = 1.0 / float(L * Cg)
    mean = jnp.dot(jnp.sum(acc, axis=0, keepdims=True), grp,
                   preferred_element_type=jnp.float32) * inv_n        # (1, Wout)
    d = acc - mean
    var = jnp.dot(jnp.sum(d * d, axis=0, keepdims=True), grp,
                  preferred_element_type=jnp.float32) * inv_n         # (1, Wout)
    y = d * jax.lax.rsqrt(var + 1e-5) * gamma + beta

    # Mish: y * tanh(softplus(y)); tanh(softplus(y)) = (e^2+2e)/(e^2+2e+2)
    e = jnp.exp(jnp.minimum(y, 20.0))
    q = e * (e + 2.0)
    t = jnp.where(y > 20.0, 1.0, q / (q + 2.0))           # PyTorch threshold=20
    return y * t


def residual_temporal_block(x, params, kernel_size=(5, 3), stride=(2, 2),
                            n_groups=8):
    """Pallas equivalent of ResidualTemporalBlock(...).forward(x).

    x: (B, T, C_in) float32 -> (B, T_out, C_out) float32.
    params = (w1, b1, gamma1, beta1, w2, b2, gamma2, beta2); conv weights are in
    (K, C_in, C_out) layout (torch Conv1d weight (O, I, K) transposed to (K, I, O)),
    biases / GroupNorm affine params have shape (1, C_out).
    """
    w1, b1, g1, be1, w2, b2, g2, be2 = params
    B, T, C_in = x.shape
    K1, K2 = kernel_size
    S1, S2 = stride
    C_out = w1.shape[2]
    assert C_out % n_groups == 0, "GroupNorm requires C_out % n_groups == 0"
    Cg = C_out // n_groups
    L1 = _causal_out_len(T, K1, S1)
    L2 = _causal_out_len(L1, K2, S2)

    # Batch-block size BB: smallest BB making BB*C_in and BB*C_out multiples of
    # 128 -> lane-dense blocks (legal lane blocking for any grid size, no
    # masked loads/stores).  Block-diag weight footprint grows as BB^2 but at
    # these channel counts it is a few hundred KiB -- far under every
    # generation's VMEM budget (v7x 64 MiB incl.).
    a_in = 128 // math.gcd(128, C_in)
    a_out = 128 // math.gcd(128, C_out)
    BB = a_in * a_out // math.gcd(a_in, a_out)            # lcm
    Bpad = ((B + BB - 1) // BB) * BB
    G = Bpad // BB                                         # "parallel" grid steps
    Win, Wout = BB * C_in, BB * C_out

    # ---- pack batch onto lanes: (B, T, C_in) -> (T, Bpad*C_in), b-major -----
    xp = jnp.zeros((Bpad, T, C_in), jnp.float32).at[:B].set(x.astype(jnp.float32))
    xp = jnp.transpose(xp, (1, 0, 2)).reshape(T, Bpad * C_in)

    # ---- grid-invariant constants (host-built, VMEM-resident) ---------------
    sel1 = _tap_select(T, L1, K1, S1)                      # (K1, L1, T)
    sel2 = _tap_select(L1, L2, K2, S2)                     # (K2, L2, L1)
    w1b = _blockdiag_weight(w1.astype(jnp.float32), BB)    # (K1, Win,  Wout)
    w2b = _blockdiag_weight(w2.astype(jnp.float32), BB)    # (K2, Wout, Wout)
    grp = _group_indicator(Wout, Cg)                       # (Wout, Wout)
    # merge the six tiny (1, C_out) params into one lane-packed (6, Wout) slab
    pv = jnp.concatenate(
        [jnp.tile(p.reshape(1, C_out).astype(jnp.float32), (1, BB))
         for p in (b1, g1, be1, b2, g2, be2)], axis=0)     # (6, Wout)

    def kernel(x_ref, s1_ref, w1_ref, s2_ref, w2_ref, grp_ref, pv_ref, o_ref):
        pvv = pv_ref[...]
        h = _conv_gn_mish(x_ref[...], s1_ref, w1_ref, grp_ref,
                          pvv[0:1], pvv[1:2], pvv[2:3], K1, L1, Cg)
        h = _conv_gn_mish(h, s2_ref, w2_ref, grp_ref,
                          pvv[3:4], pvv[4:5], pvv[5:6], K2, L2, Cg)
        o_ref[...] = h.astype(o_ref.dtype)

    const2 = lambda g: (0, 0)
    const3 = lambda g: (0, 0, 0)
    out = pl.pallas_call(
        kernel,
        out_shape=jax.ShapeDtypeStruct((L2, Bpad * C_out), jnp.float32),
        grid=(G,),
        in_specs=[
            pl.BlockSpec((T, Win), lambda g: (0, g)),      # x, lane-blocked by batch
            pl.BlockSpec((K1, L1, T), const3),             # tap-select, block 0
            pl.BlockSpec((K1, Win, Wout), const3),         # block-diag weights, block 0
            pl.BlockSpec((K2, L2, L1), const3),            # tap-select, block 1
            pl.BlockSpec((K2, Wout, Wout), const3),        # block-diag weights, block 1
            pl.BlockSpec((Wout, Wout), const2),            # GroupNorm group indicator
            pl.BlockSpec((6, Wout), const2),               # bias/gamma/beta (both blocks)
        ],
        out_specs=pl.BlockSpec((L2, Wout), lambda g: (0, g)),
        compiler_params=pltpu.CompilerParams(
            dimension_semantics=("parallel",),
            vmem_limit_bytes=32 * 1024 * 1024),
    )(xp, sel1, w1b, sel2, w2b, grp, pv)

    # unpack lanes -> (B, T_out, C_out); padded batches are discarded
    return out.reshape(L2, Bpad, C_out).transpose(1, 0, 2)[:B]


# ----------------------------- pure-JAX reference ---------------------------
def _ref_block(x_bct, w_kio, b, gamma, beta, K, S, n_groups):
    """Mirror Conv1dBlock (CausalConv1d -> GroupNorm -> Mish) on (B, C, T)."""
    w_oik = jnp.transpose(w_kio, (2, 1, 0))                # (C_out, C_in, K) torch layout
    P = K - 1
    y = jax.lax.conv_general_dilated(
        x_bct, w_oik, window_strides=(S,), padding=[(P, P)],
        dimension_numbers=("NCH", "OIH", "NCH"),
        precision=jax.lax.Precision.HIGHEST)
    y = y + b.reshape(1, -1, 1)
    last_n = (2 * P - K) // S + 1
    if last_n > 0:
        y = y[:, :, :-last_n]
    Bb, C, L = y.shape
    yg = y.reshape(Bb, n_groups, C // n_groups, L)
    mean = jnp.mean(yg, axis=(2, 3), keepdims=True)
    var = jnp.mean((yg - mean) ** 2, axis=(2, 3), keepdims=True)
    yn = ((yg - mean) / jnp.sqrt(var + 1e-5)).reshape(Bb, C, L)
    yn = yn * gamma.reshape(1, -1, 1) + beta.reshape(1, -1, 1)
    sp = jnp.logaddexp(yn, 0.0)                            # softplus
    return yn * jnp.tanh(sp)                               # Mish


def _reference(x, params, kernel_size, stride, n_groups):
    w1, b1, g1, be1, w2, b2, g2, be2 = params
    y = jnp.transpose(x, (0, 2, 1))                        # (B, C_in, T)
    y = _ref_block(y, w1, b1, g1, be1, kernel_size[0], stride[0], n_groups)
    y = _ref_block(y, w2, b2, g2, be2, kernel_size[1], stride[1], n_groups)
    return jnp.transpose(y, (0, 2, 1))                     # (B, T_out, C_out)


if __name__ == "__main__":
    key = jax.random.PRNGKey(0)
    B, T, C_in, C_out = 12, 16, 8, 16
    NG = 8
    KS = (5, 3)
    ST = (2, 2)

    ks = jax.random.split(key, 9)
    x = jax.random.normal(ks[0], (B, T, C_in), jnp.float32)
    w1 = jax.random.normal(ks[1], (KS[0], C_in, C_out), jnp.float32) / math.sqrt(KS[0] * C_in)
    b1 = 0.1 * jax.random.normal(ks[2], (1, C_out), jnp.float32)
    g1 = 1.0 + 0.1 * jax.random.normal(ks[3], (1, C_out), jnp.float32)
    be1 = 0.1 * jax.random.normal(ks[4], (1, C_out), jnp.float32)
    w2 = jax.random.normal(ks[5], (KS[1], C_out, C_out), jnp.float32) / math.sqrt(KS[1] * C_out)
    b2 = 0.1 * jax.random.normal(ks[6], (1, C_out), jnp.float32)
    g2 = 1.0 + 0.1 * jax.random.normal(ks[7], (1, C_out), jnp.float32)
    be2 = 0.1 * jax.random.normal(ks[8], (1, C_out), jnp.float32)
    params = (w1, b1, g1, be1, w2, b2, g2, be2)

    out = residual_temporal_block(x, params, KS, ST, NG)
    out = jax.block_until_ready(out)

    ref = _reference(x, params, KS, ST, NG)
    T_out = _causal_out_len(_causal_out_len(T, KS[0], ST[0]), KS[1], ST[1])
    assert out.shape == (B, T_out, C_out), (out.shape, (B, T_out, C_out))
    max_err = float(jnp.max(jnp.abs(out - ref)))
    assert jnp.allclose(out, ref, atol=2e-4, rtol=2e-4), f"max abs err {max_err}"
    print("KERNEL_OK")
</pallas_src>

<mosaic_0001>
module attributes {stable_mosaic.version = 11 : i64} {
  func.func @kernel(%arg0: i32, %arg1: memref<16x128xf32, #tpu.memory_space<vmem>>, %arg2: memref<5x8x16xf32, #tpu.memory_space<vmem>>, %arg3: memref<5x128x256xf32, #tpu.memory_space<vmem>>, %arg4: memref<3x4x8xf32, #tpu.memory_space<vmem>>, %arg5: memref<3x256x256xf32, #tpu.memory_space<vmem>>, %arg6: memref<256x256xf32, #tpu.memory_space<vmem>>, %arg7: memref<6x256xf32, #tpu.memory_space<vmem>>, %arg8: memref<4x256xf32, #tpu.memory_space<vmem>>) attributes {dimension_semantics = [#tpu.dimension_semantics<parallel>], iteration_bounds = array<i64: 1>, scalar_prefetch = 0 : i64, scratch_operands = 0 : i64, tpu.core_type = #tpu.core_type<tc>, window_params = [{transform_indices = @transform_0, window_bounds = array<i64: 16, 128>}, {pipeline_mode = #tpu.pipeline_mode<synchronous>, transform_indices = @transform_1, window_bounds = array<i64: 5, 8, 16>}, {pipeline_mode = #tpu.pipeline_mode<synchronous>, transform_indices = @transform_2, window_bounds = array<i64: 5, 128, 256>}, {pipeline_mode = #tpu.pipeline_mode<synchronous>, transform_indices = @transform_3, window_bounds = array<i64: 3, 4, 8>}, {pipeline_mode = #tpu.pipeline_mode<synchronous>, transform_indices = @transform_4, window_bounds = array<i64: 3, 256, 256>}, {pipeline_mode = #tpu.pipeline_mode<synchronous>, transform_indices = @transform_5, window_bounds = array<i64: 256, 256>}, {pipeline_mode = #tpu.pipeline_mode<synchronous>, transform_indices = @transform_6, window_bounds = array<i64: 6, 256>}, {transform_indices = @transform_7, window_bounds = array<i64: 4, 256>}]} {
    %c0 = arith.constant 0 : index
    %c0_0 = arith.constant 0 : index
    %0 = vector.load %arg7[%c0, %c0_0] : memref<6x256xf32, #tpu.memory_space<vmem>>, vector<6x256xf32>
    %c0_1 = arith.constant 0 : index
    %c0_2 = arith.constant 0 : index
    %1 = vector.load %arg1[%c0_1, %c0_2] : memref<16x128xf32, #tpu.memory_space<vmem>>, vector<16x128xf32>
    %2 = vector.extract_strided_slice %0 {offsets = [0, 0], sizes = [1, 256], strides = [1, 1]} : vector<6x256xf32> to vector<1x256xf32>
    %3 = vector.extract_strided_slice %0 {offsets = [1, 0], sizes = [1, 256], strides = [1, 1]} : vector<6x256xf32> to vector<1x256xf32>
    %4 = vector.extract_strided_slice %0 {offsets = [2, 0], sizes = [1, 256], strides = [1, 1]} : vector<6x256xf32> to vector<1x256xf32>
    %c0_3 = arith.constant 0 : index
    %c0_4 = arith.constant 0 : index
    %5 = vector.load %arg6[%c0_3, %c0_4] : memref<256x256xf32, #tpu.memory_space<vmem>>, vector<256x256xf32>
    %cst = arith.constant 0.000000e+00 : f32
    %6 = vector.broadcast %cst : f32 to vector<8x256xf32>
    %c0_5 = arith.constant 0 : index
    %c0_6 = arith.constant 0 : index
    %c0_7 = arith.constant 0 : index
    %7 = vector.load %arg2[%c0_5, %c0_6, %c0_7] : memref<5x8x16xf32, #tpu.memory_space<vmem>>, vector<1x8x16xf32>
    %8 = vector.shape_cast %7 : vector<1x8x16xf32> to vector<8x16xf32>
    %cst_8 = arith.constant dense<0.000000e+00> : vector<8x128xf32>
    %9 = tpu.matmul %8, %1, %cst_8 {dimension_numbers = #tpu.dot_dimension_numbers<[1], [0], [0], [1], [0, 0, 1, 1], [], []>} : vector<8x16xf32>, vector<16x128xf32>, vector<8x128xf32> -> vector<8x128xf32>
    %c0_9 = arith.constant 0 : index
    %c0_10 = arith.constant 0 : index
    %c0_11 = arith.constant 0 : index
    %10 = vector.load %arg3[%c0_9, %c0_10, %c0_11] : memref<5x128x256xf32, #tpu.memory_space<vmem>>, vector<1x128x256xf32>
    %11 = vector.shape_cast %10 : vector<1x128x256xf32> to vector<128x256xf32>
    %cst_12 = arith.constant dense<0.000000e+00> : vector<8x256xf32>
    %12 = tpu.matmul %9, %11, %cst_12 {dimension_numbers = #tpu.dot_dimension_numbers<[1], [0], [0], [1], [0, 0, 1, 1], [], []>} : vector<8x128xf32>, vector<128x256xf32>, vector<8x256xf32> -> vector<8x256xf32>
    %13 = arith.addf %6, %12 : vector<8x256xf32>
    %c1 = arith.constant 1 : index
    %c0_13 = arith.constant 0 : index
    %c0_14 = arith.constant 0 : index
    %14 = vector.load %arg2[%c1, %c0_13, %c0_14] : memref<5x8x16xf32, #tpu.memory_space<vmem>>, vector<1x8x16xf32>
    %15 = vector.shape_cast %14 : vector<1x8x16xf32> to vector<8x16xf32>
    %cst_15 = arith.constant dense<0.000000e+00> : vector<8x128xf32>
    %16 = tpu.matmul %15, %1, %cst_15 {dimension_numbers = #tpu.dot_dimension_numbers<[1], [0], [0], [1], [0, 0, 1, 1], [], []>} : vector<8x16xf32>, vector<16x128xf32>, vector<8x128xf32> -> vector<8x128xf32>
    %c1_16 = arith.constant 1 : index
    %c0_17 = arith.constant 0 : index
    %c0_18 = arith.constant 0 : index
    %17 = vector.load %arg3[%c1_16, %c0_17, %c0_18] : memref<5x128x256xf32, #tpu.memory_space<vmem>>, vector<1x128x256xf32>
    %18 = vector.shape_cast %17 : vector<1x128x256xf32> to vector<128x256xf32>
    %cst_19 = arith.constant dense<0.000000e+00> : vector<8x256xf32>
    %19 = tpu.matmul %16, %18, %cst_19 {dimension_numbers = #tpu.dot_dimension_numbers<[1], [0], [0], [1], [0, 0, 1, 1], [], []>} : vector<8x128xf32>, vector<128x256xf32>, vector<8x256xf32> -> vector<8x256xf32>
    %20 = arith.addf %13, %19 : vector<8x256xf32>
    %c2 = arith.constant 2 : index
    %c0_20 = arith.constant 0 : index
    %c0_21 = arith.constant 0 : index
    %21 = vector.load %arg2[%c2, %c0_20, %c0_21] : memref<5x8x16xf32, #tpu.memory_space<vmem>>, vector<1x8x16xf32>
    %22 = vector.shape_cast %21 : vector<1x8x16xf32> to vector<8x16xf32>
    %cst_22 = arith.constant dense<0.000000e+00> : vector<8x128xf32>
    %23 = tpu.matmul %22, %1, %cst_22 {dimension_numbers = #tpu.dot_dimension_numbers<[1], [0], [0], [1], [0, 0, 1, 1], [], []>} : vector<8x16xf32>, vector<16x128xf32>, vector<8x128xf32> -> vector<8x128xf32>
    %c2_23 = arith.constant 2 : index
    %c0_24 = arith.constant 0 : index
    %c0_25 = arith.constant 0 : index
    %24 = vector.load %arg3[%c2_23, %c0_24, %c0_25] : memref<5x128x256xf32, #tpu.memory_space<vmem>>, vector<1x128x256xf32>
    %25 = vector.shape_cast %24 : vector<1x128x256xf32> to vector<128x256xf32>
    %cst_26 = arith.constant dense<0.000000e+00> : vector<8x256xf32>
    %26 = tpu.matmul %23, %25, %cst_26 {dimension_numbers = #tpu.dot_dimension_numbers<[1], [0], [0], [1], [0, 0, 1, 1], [], []>} : vector<8x128xf32>, vector<128x256xf32>, vector<8x256xf32> -> vector<8x256xf32>
    %27 = arith.addf %20, %26 : vector<8x256xf32>
    %c3 = arith.constant 3 : index
    %c0_27 = arith.constant 0 : index
    %c0_28 = arith.constant 0 : index
    %28 = vector.load %arg2[%c3, %c0_27, %c0_28] : memref<5x8x16xf32, #tpu.memory_space<vmem>>, vector<1x8x16xf32>
    %29 = vector.shape_cast %28 : vector<1x8x16xf32> to vector<8x16xf32>
    %cst_29 = arith.constant dense<0.000000e+00> : vector<8x128xf32>
    %30 = tpu.matmul %29, %1, %cst_29 {dimension_numbers = #tpu.dot_dimension_numbers<[1], [0], [0], [1], [0, 0, 1, 1], [], []>} : vector<8x16xf32>, vector<16x128xf32>, vector<8x128xf32> -> vector<8x128xf32>
    %c3_30 = arith.constant 3 : index
    %c0_31 = arith.constant 0 : index
    %c0_32 = arith.constant 0 : index
    %31 = vector.load %arg3[%c3_30, %c0_31, %c0_32] : memref<5x128x256xf32, #tpu.memory_space<vmem>>, vector<1x128x256xf32>
    %32 = vector.shape_cast %31 : vector<1x128x256xf32> to vector<128x256xf32>
    %cst_33 = arith.constant dense<0.000000e+00> : vector<8x256xf32>
    %33 = tpu.matmul %30, %32, %cst_33 {dimension_numbers = #tpu.dot_dimension_numbers<[1], [0], [0], [1], [0, 0, 1, 1], [], []>} : vector<8x128xf32>, vector<128x256xf32>, vector<8x256xf32> -> vector<8x256xf32>
    %34 = arith.addf %27, %33 : vector<8x256xf32>
    %c4 = arith.constant 4 : index
    %c0_34 = arith.constant 0 : index
    %c0_35 = arith.constant 0 : index
    %35 = vector.load %arg2[%c4, %c0_34, %c0_35] : memref<5x8x16xf32, #tpu.memory_space<vmem>>, vector<1x8x16xf32>
    %36 = vector.shape_cast %35 : vector<1x8x16xf32> to vector<8x16xf32>
    %cst_36 = arith.constant dense<0.000000e+00> : vector<8x128xf32>
    %37 = tpu.matmul %36, %1, %cst_36 {dimension_numbers = #tpu.dot_dimension_numbers<[1], [0], [0], [1], [0, 0, 1, 1], [], []>} : vector<8x16xf32>, vector<16x128xf32>, vector<8x128xf32> -> vector<8x128xf32>
    %c4_37 = arith.constant 4 : index
    %c0_38 = arith.constant 0 : index
    %c0_39 = arith.constant 0 : index
    %38 = vector.load %arg3[%c4_37, %c0_38, %c0_39] : memref<5x128x256xf32, #tpu.memory_space<vmem>>, vector<1x128x256xf32>
    %39 = vector.shape_cast %38 : vector<1x128x256xf32> to vector<128x256xf32>
    %cst_40 = arith.constant dense<0.000000e+00> : vector<8x256xf32>
    %40 = tpu.matmul %37, %39, %cst_40 {dimension_numbers = #tpu.dot_dimension_numbers<[1], [0], [0], [1], [0, 0, 1, 1], [], []>} : vector<8x128xf32>, vector<128x256xf32>, vector<8x256xf32> -> vector<8x256xf32>
    %41 = arith.addf %34, %40 : vector<8x256xf32>
    %42 = vector.broadcast %2 : vector<1x256xf32> to vector<8x256xf32>
    %43 = arith.addf %41, %42 : vector<8x256xf32>
    %cst_41 = arith.constant dense<0.000000e+00> : vector<256xf32>
    %44 = vector.multi_reduction <add>, %43, %cst_41 [0] : vector<8x256xf32> to vector<256xf32>
    %45 = vector.shape_cast %44 : vector<256xf32> to vector<1x256xf32>
    %cst_42 = arith.constant dense<0.000000e+00> : vector<1x256xf32>
    %46 = tpu.matmul %45, %5, %cst_42 {dimension_numbers = #tpu.dot_dimension_numbers<[1], [0], [0], [1], [0, 0, 1, 1], [], []>} : vector<1x256xf32>, vector<256x256xf32>, vector<1x256xf32> -> vector<1x256xf32>
    %cst_43 = arith.constant 6.250000e-02 : f32
    %47 = vector.broadcast %cst_43 : f32 to vector<1x256xf32>
    %48 = arith.mulf %46, %47 : vector<1x256xf32>
    %49 = vector.broadcast %48 : vector<1x256xf32> to vector<8x256xf32>
    %50 = arith.subf %43, %49 : vector<8x256xf32>
    %51 = arith.mulf %50, %50 : vector<8x256xf32>
    %cst_44 = arith.constant dense<0.000000e+00> : vector<256xf32>
    %52 = vector.multi_reduction <add>, %51, %cst_44 [0] : vector<8x256xf32> to vector<256xf32>
    %53 = vector.shape_cast %52 : vector<256xf32> to vector<1x256xf32>
    %cst_45 = arith.constant dense<0.000000e+00> : vector<1x256xf32>
    %54 = tpu.matmul %53, %5, %cst_45 {dimension_numbers = #tpu.dot_dimension_numbers<[1], [0], [0], [1], [0, 0, 1, 1], [], []>} : vector<1x256xf32>, vector<256x256xf32>, vector<1x256xf32> -> vector<1x256xf32>
    %cst_46 = arith.constant 6.250000e-02 : f32
    %55 = vector.broadcast %cst_46 : f32 to vector<1x256xf32>
    %56 = arith.mulf %54, %55 : vector<1x256xf32>
    %cst_47 = arith.constant 9.99999974E-6 : f32
    %57 = vector.broadcast %cst_47 : f32 to vector<1x256xf32>
    %58 = arith.addf %56, %57 : vector<1x256xf32>
    %59 = math.rsqrt %58 : vector<1x256xf32>
    %60 = vector.broadcast %59 : vector<1x256xf32> to vector<8x256xf32>
    %61 = arith.mulf %50, %60 : vector<8x256xf32>
    %62 = vector.broadcast %3 : vector<1x256xf32> to vector<8x256xf32>
    %63 = arith.mulf %61, %62 : vector<8x256xf32>
    %64 = vector.broadcast %4 : vector<1x256xf32> to vector<8x256xf32>
    %65 = arith.addf %63, %64 : vector<8x256xf32>
    %cst_48 = arith.constant 2.000000e+01 : f32
    %66 = vector.broadcast %cst_48 : f32 to vector<8x256xf32>
    %67 = arith.minimumf %65, %66 : vector<8x256xf32>
    %68 = math.exp %67 : vector<8x256xf32>
    %cst_49 = arith.constant 2.000000e+00 : f32
    %69 = vector.broadcast %cst_49 : f32 to vector<8x256xf32>
    %70 = arith.addf %68, %69 : vector<8x256xf32>
    %71 = arith.mulf %68, %70 : vector<8x256xf32>
    %cst_50 = arith.constant 2.000000e+01 : f32
    %72 = vector.broadcast %cst_50 : f32 to vector<8x256xf32>
    %73 = arith.cmpf ogt, %65, %72 : vector<8x256xf32>
    %cst_51 = arith.constant 2.000000e+00 : f32
    %74 = vector.broadcast %cst_51 : f32 to vector<8x256xf32>
    %75 = arith.addf %71, %74 : vector<8x256xf32>
    %76 = arith.divf %71, %75 : vector<8x256xf32>
    %cst_52 = arith.constant 1.000000e+00 : f32
    %77 = vector.broadcast %cst_52 : f32 to vector<8x256xf32>
    %78 = arith.select %73, %77, %76 : vector<8x256xi1>, vector<8x256xf32>
    %79 = arith.mulf %65, %78 : vector<8x256xf32>
    %80 = vector.extract_strided_slice %0 {offsets = [3, 0], sizes = [1, 256], strides = [1, 1]} : vector<6x256xf32> to vector<1x256xf32>
    %81 = vector.extract_strided_slice %0 {offsets = [4, 0], sizes = [1, 256], strides = [1, 1]} : vector<6x256xf32> to vector<1x256xf32>
    %82 = vector.extract_strided_slice %0 {offsets = [5, 0], sizes = [1, 256], strides = [1, 1]} : vector<6x256xf32> to vector<1x256xf32>
    %c0_53 = arith.constant 0 : index
    %c0_54 = arith.constant 0 : index
    %83 = vector.load %arg6[%c0_53, %c0_54] : memref<256x256xf32, #tpu.memory_space<vmem>>, vector<256x256xf32>
    %cst_55 = arith.constant 0.000000e+00 : f32
    %84 = vector.broadcast %cst_55 : f32 to vector<4x256xf32>
    %c0_56 = arith.constant 0 : index
    %c0_57 = arith.constant 0 : index
    %c0_58 = arith.constant 0 : index
    %85 = vector.load %arg4[%c0_56, %c0_57, %c0_58] : memref<3x4x8xf32, #tpu.memory_space<vmem>>, vector<1x4x8xf32>
    %86 = vector.shape_cast %85 : vector<1x4x8xf32> to vector<4x8xf32>
    %cst_59 = arith.constant dense<0.000000e+00> : vector<4x256xf32>
    %87 = tpu.matmul %86, %79, %cst_59 {dimension_numbers = #tpu.dot_dimension_numbers<[1], [0], [0], [1], [0, 0, 1, 1], [], []>} : vector<4x8xf32>, vector<8x256xf32>, vector<4x256xf32> -> vector<4x256xf32>
    %c0_60 = arith.constant 0 : index
    %c0_61 = arith.constant 0 : index
    %c0_62 = arith.constant 0 : index
    %88 = vector.load %arg5[%c0_60, %c0_61, %c0_62] : memref<3x256x256xf32, #tpu.memory_space<vmem>>, vector<1x256x256xf32>
    %89 = vector.shape_cast %88 : vector<1x256x256xf32> to vector<256x256xf32>
    %cst_63 = arith.constant dense<0.000000e+00> : vector<4x256xf32>
    %90 = tpu.matmul %87, %89, %cst_63 {dimension_numbers = #tpu.dot_dimension_numbers<[1], [0], [0], [1], [0, 0, 1, 1], [], []>} : vector<4x256xf32>, vector<256x256xf32>, vector<4x256xf32> -> vector<4x256xf32>
    %91 = arith.addf %84, %90 : vector<4x256xf32>
    %c1_64 = arith.constant 1 : index
    %c0_65 = arith.constant 0 : index
    %c0_66 = arith.constant 0 : index
    %92 = vector.load %arg4[%c1_64, %c0_65, %c0_66] : memref<3x4x8xf32, #tpu.memory_space<vmem>>, vector<1x4x8xf32>
    %93 = vector.shape_cast %92 : vector<1x4x8xf32> to vector<4x8xf32>
    %cst_67 = arith.constant dense<0.000000e+00> : vector<4x256xf32>
    %94 = tpu.matmul %93, %79, %cst_67 {dimension_numbers = #tpu.dot_dimension_numbers<[1], [0], [0], [1], [0, 0, 1, 1], [], []>} : vector<4x8xf32>, vector<8x256xf32>, vector<4x256xf32> -> vector<4x256xf32>
    %c1_68 = arith.constant 1 : index
    %c0_69 = arith.constant 0 : index
    %c0_70 = arith.constant 0 : index
    %95 = vector.load %arg5[%c1_68, %c0_69, %c0_70] : memref<3x256x256xf32, #tpu.memory_space<vmem>>, vector<1x256x256xf32>
    %96 = vector.shape_cast %95 : vector<1x256x256xf32> to vector<256x256xf32>
    %cst_71 = arith.constant dense<0.000000e+00> : vector<4x256xf32>
    %97 = tpu.matmul %94, %96, %cst_71 {dimension_numbers = #tpu.dot_dimension_numbers<[1], [0], [0], [1], [0, 0, 1, 1], [], []>} : vector<4x256xf32>, vector<256x256xf32>, vector<4x256xf32> -> vector<4x256xf32>
    %98 = arith.addf %91, %97 : vector<4x256xf32>
    %c2_72 = arith.constant 2 : index
    %c0_73 = arith.constant 0 : index
    %c0_74 = arith.constant 0 : index
    %99 = vector.load %arg4[%c2_72, %c0_73, %c0_74] : memref<3x4x8xf32, #tpu.memory_space<vmem>>, vector<1x4x8xf32>
    %100 = vector.shape_cast %99 : vector<1x4x8xf32> to vector<4x8xf32>
    %cst_75 = arith.constant dense<0.000000e+00> : vector<4x256xf32>
    %101 = tpu.matmul %100, %79, %cst_75 {dimension_numbers = #tpu.dot_dimension_numbers<[1], [0], [0], [1], [0, 0, 1, 1], [], []>} : vector<4x8xf32>, vector<8x256xf32>, vector<4x256xf32> -> vector<4x256xf32>
    %c2_76 = arith.constant 2 : index
    %c0_77 = arith.constant 0 : index
    %c0_78 = arith.constant 0 : index
    %102 = vector.load %arg5[%c2_76, %c0_77, %c0_78] : memref<3x256x256xf32, #tpu.memory_space<vmem>>, vector<1x256x256xf32>
    %103 = vector.shape_cast %102 : vector<1x256x256xf32> to vector<256x256xf32>
    %cst_79 = arith.constant dense<0.000000e+00> : vector<4x256xf32>
    %104 = tpu.matmul %101, %103, %cst_79 {dimension_numbers = #tpu.dot_dimension_numbers<[1], [0], [0], [1], [0, 0, 1, 1], [], []>} : vector<4x256xf32>, vector<256x256xf32>, vector<4x256xf32> -> vector<4x256xf32>
    %105 = arith.addf %98, %104 : vector<4x256xf32>
    %106 = vector.broadcast %80 : vector<1x256xf32> to vector<4x256xf32>
    %107 = arith.addf %105, %106 : vector<4x256xf32>
    %cst_80 = arith.constant dense<0.000000e+00> : vector<256xf32>
    %108 = vector.multi_reduction <add>, %107, %cst_80 [0] : vector<4x256xf32> to vector<256xf32>
    %109 = vector.shape_cast %108 : vector<256xf32> to vector<1x256xf32>
    %cst_81 = arith.constant dense<0.000000e+00> : vector<1x256xf32>
    %110 = tpu.matmul %109, %83, %cst_81 {dimension_numbers = #tpu.dot_dimension_numbers<[1], [0], [0], [1], [0, 0, 1, 1], [], []>} : vector<1x256xf32>, vector<256x256xf32>, vector<1x256xf32> -> vector<1x256xf32>
    %cst_82 = arith.constant 1.250000e-01 : f32
    %111 = vector.broadcast %cst_82 : f32 to vector<1x256xf32>
    %112 = arith.mulf %110, %111 : vector<1x256xf32>
    %113 = vector.broadcast %112 : vector<1x256xf32> to vector<4x256xf32>
    %114 = arith.subf %107, %113 : vector<4x256xf32>
    %115 = arith.mulf %114, %114 : vector<4x256xf32>
    %cst_83 = arith.constant dense<0.000000e+00> : vector<256xf32>
    %116 = vector.multi_reduction <add>, %115, %cst_83 [0] : vector<4x256xf32> to vector<256xf32>
    %117 = vector.shape_cast %116 : vector<256xf32> to vector<1x256xf32>
    %cst_84 = arith.constant dense<0.000000e+00> : vector<1x256xf32>
    %118 = tpu.matmul %117, %83, %cst_84 {dimension_numbers = #tpu.dot_dimension_numbers<[1], [0], [0], [1], [0, 0, 1, 1], [], []>} : vector<1x256xf32>, vector<256x256xf32>, vector<1x256xf32> -> vector<1x256xf32>
    %cst_85 = arith.constant 1.250000e-01 : f32
    %119 = vector.broadcast %cst_85 : f32 to vector<1x256xf32>
    %120 = arith.mulf %118, %119 : vector<1x256xf32>
    %cst_86 = arith.constant 9.99999974E-6 : f32
    %121 = vector.broadcast %cst_86 : f32 to vector<1x256xf32>
    %122 = arith.addf %120, %121 : vector<1x256xf32>
    %123 = math.rsqrt %122 : vector<1x256xf32>
    %124 = vector.broadcast %123 : vector<1x256xf32> to vector<4x256xf32>
    %125 = arith.mulf %114, %124 : vector<4x256xf32>
    %126 = vector.broadcast %81 : vector<1x256xf32> to vector<4x256xf32>
    %127 = arith.mulf %125, %126 : vector<4x256xf32>
    %128 = vector.broadcast %82 : vector<1x256xf32> to vector<4x256xf32>
    %129 = arith.addf %127, %128 : vector<4x256xf32>
    %cst_87 = arith.constant 2.000000e+01 : f32
    %130 = vector.broadcast %cst_87 : f32 to vector<4x256xf32>
    %131 = arith.minimumf %129, %130 : vector<4x256xf32>
    %132 = math.exp %131 : vector<4x256xf32>
    %cst_88 = arith.constant 2.000000e+00 : f32
    %133 = vector.broadcast %cst_88 : f32 to vector<4x256xf32>
    %134 = arith.addf %132, %133 : vector<4x256xf32>
    %135 = arith.mulf %132, %134 : vector<4x256xf32>
    %cst_89 = arith.constant 2.000000e+01 : f32
    %136 = vector.broadcast %cst_89 : f32 to vector<4x256xf32>
    %137 = arith.cmpf ogt, %129, %136 : vector<4x256xf32>
    %cst_90 = arith.constant 2.000000e+00 : f32
    %138 = vector.broadcast %cst_90 : f32 to vector<4x256xf32>
    %139 = arith.addf %135, %138 : vector<4x256xf32>
    %140 = arith.divf %135, %139 : vector<4x256xf32>
    %cst_91 = arith.constant 1.000000e+00 : f32
    %141 = vector.broadcast %cst_91 : f32 to vector<4x256xf32>
    %142 = arith.select %137, %141, %140 : vector<4x256xi1>, vector<4x256xf32>
    %143 = arith.mulf %129, %142 : vector<4x256xf32>
    %c0_92 = arith.constant 0 : index
    %c0_93 = arith.constant 0 : index
    %144 = vector.load %arg8[%c0_92, %c0_93] : memref<4x256xf32, #tpu.memory_space<vmem>>, vector<4x256xf32>
    tpu.vector_store %arg8[%c0_92, %c0_93], %143 {strides = array<i32>} : memref<4x256xf32, #tpu.memory_space<vmem>>, vector<4x256xf32>,
    return
  }
  func.func @transform_0(%arg0: i32) -> (i32, i32) {
    %c0_i32 = arith.constant 0 : i32
    %c0_i32_0 = arith.constant 0 : i32
    return %c0_i32, %arg0 : i32, i32
  }
  func.func @transform_1(%arg0: i32) -> (i32, i32, i32) {
    %c0_i32 = arith.constant 0 : i32
    %c0_i32_0 = arith.constant 0 : i32
    %c0_i32_1 = arith.constant 0 : i32
    %c0_i32_2 = arith.constant 0 : i32
    return %c0_i32, %c0_i32_0, %c0_i32_1 : i32, i32, i32
  }
  func.func @transform_2(%arg0: i32) -> (i32, i32, i32) {
    %c0_i32 = arith.constant 0 : i32
    %c0_i32_0 = arith.constant 0 : i32
    %c0_i32_1 = arith.constant 0 : i32
    %c0_i32_2 = arith.constant 0 : i32
    return %c0_i32, %c0_i32_0, %c0_i32_1 : i32, i32, i32
  }
  func.func @transform_3(%arg0: i32) -> (i32, i32, i32) {
    %c0_i32 = arith.constant 0 : i32
    %c0_i32_0 = arith.constant 0 : i32
    %c0_i32_1 = arith.constant 0 : i32
    %c0_i32_2 = arith.constant 0 : i32
    return %c0_i32, %c0_i32_0, %c0_i32_1 : i32, i32, i32
  }
  func.func @transform_4(%arg0: i32) -> (i32, i32, i32) {
    %c0_i32 = arith.constant 0 : i32
    %c0_i32_0 = arith.constant 0 : i32
    %c0_i32_1 = arith.constant 0 : i32
    %c0_i32_2 = arith.constant 0 : i32
    return %c0_i32, %c0_i32_0, %c0_i32_1 : i32, i32, i32
  }
  func.func @transform_5(%arg0: i32) -> (i32, i32) {
    %c0_i32 = arith.constant 0 : i32
    %c0_i32_0 = arith.constant 0 : i32
    %c0_i32_1 = arith.constant 0 : i32
    return %c0_i32, %c0_i32_0 : i32, i32
  }
  func.func @transform_6(%arg0: i32) -> (i32, i32) {
    %c0_i32 = arith.constant 0 : i32
    %c0_i32_0 = arith.constant 0 : i32
    %c0_i32_1 = arith.constant 0 : i32
    return %c0_i32, %c0_i32_0 : i32, i32
  }
  func.func @transform_7(%arg0: i32) -> (i32, i32) {
    %c0_i32 = arith.constant 0 : i32
    %c0_i32_0 = arith.constant 0 : i32
    return %c0_i32, %arg0 : i32, i32
  }
}

</mosaic_0001>

<llo_original>
// kernel: tpu_custom_call.1
$region0: #{tpu_custom_call.1}
  #allocation0 [shape = 'u32[]', space=smem, size = 0x4, offset = 0x4, fixed_abs, tag = 'smem constant byte address 0x4 - core index']
  #allocation1 [shape = 'u32[144,128]{1,0:T(1,128)}', space=vmem, size = 0x12000, scoped, tag = 'internal scratch']
  %s0 = inlined_call_operand.hbm [shape: f32[16,128], index: 0, kind: input, shape index: {}]
  %s1 = inlined_call_operand.hbm [shape: f32[5,8,16], index: 1, kind: input, shape index: {}]
  %s2 = inlined_call_operand.hbm [shape: f32[5,128,256], index: 2, kind: input, shape index: {}]
  %s3 = inlined_call_operand.hbm [shape: f32[3,4,8], index: 3, kind: input, shape index: {}]
  %s4 = inlined_call_operand.hbm [shape: f32[3,256,256], index: 4, kind: input, shape index: {}]
  %s5 = inlined_call_operand.hbm [shape: f32[256,256], index: 5, kind: input, shape index: {}]
  %s6 = inlined_call_operand.vmem [shape: f32[6,256], index: 6, kind: input, shape index: {}]
  %s7 = inlined_call_operand.hbm [shape: f32[4,256], index: 7, kind: output, shape index: {}]
  %s8 = sld [smem:[#allocation0]]
  $region62: #{tpu_custom_call.1} parent=0
    _
  %s10 = ssub.s32 1, %s8
  %s11 = scalar_select 0, %s10, %s8
  $region1: #{tpu_custom_call.1} parent=0
    #allocation2 [shape = 'u8[8192]{0}', space=vmem, size = 0x2000, scoped, tag = 'input window, operand 0, single buffered']
    #allocation3 [shape = 's32[1]{0}', space=sflag, size = 0x4, scoped, tag = 'scoped memory for tpu_custom_call.1']
    #allocation4 [shape = 's32[1]{0}', space=sflag, size = 0x4, scoped, tag = 'scoped memory for tpu_custom_call.1']
    #allocation5 [shape = 'u8[20480]{0}', space=vmem, size = 0x5000, scoped, tag = 'input window, operand 1, single buffered']
    #allocation6 [shape = 's32[1]{0}', space=sflag, size = 0x4, scoped, tag = 'scoped memory for tpu_custom_call.1']
    #allocation7 [shape = 'u8[655360]{0}', space=vmem, size = 0xa0000, scoped, tag = 'input window, operand 2, single buffered']
    #allocation8 [shape = 'u8[6144]{0}', space=vmem, size = 0x1800, scoped, tag = 'input window, operand 3, single buffered']
    #allocation9 [shape = 's32[1]{0}', space=sflag, size = 0x4, scoped, tag = 'scoped memory for tpu_custom_call.1']
    #allocation10 [shape = 'u8[786432]{0}', space=vmem, size = 0xc0000, scoped, tag = 'input window, operand 4, single buffered']
    #allocation11 [shape = 'u8[262144]{0}', space=vmem, size = 0x40000, scoped, tag = 'input window, operand 5, single buffered']
    #allocation12 [shape = 's32[1]{0}', space=sflag, size = 0x4, scoped, tag = 'scoped memory for tpu_custom_call.1']
    #allocation13 [shape = 'u8[4096]{0}', space=vmem, size = 0x1000, scoped, tag = 'output window, operand 0, single buffered']
    %12 = vsyncpa [#allocation3], 0
    %13 = vsyncpa [#allocation6], 0
    %14 = vsyncpa [#allocation9], 0
    %15 = vsyncpa [#allocation12], 0
    %16 = vsyncpa [#allocation4], 0
    // Predicated region
    $region2: #{tpu_custom_call.1} parent=1 // pred_check
      _
    $region3: #{tpu_custom_call.1} parent=1 // pred_check_branch
      %18 = sbr.rel (0) target = $region5
    $region4: #{tpu_custom_call.1} parent=1 // pred_region
      %s20 = ssub.s32 256, 256
      %21 = vsyncadd [#allocation3], %s20
      %s22 = sshll.u32 [#allocation2], 4
      %s23 = int_to_ptr.vmem [resolvable:$true] %s22
      %28 = dma.hbm_to_vmem [thread:$0]  %s0, 256, %s23, [#allocation3], 128, 128, 8
    $region5: #{tpu_custom_call.1} parent=1 // pred_fallthru
      _
    // Predicated region
    $region6: #{tpu_custom_call.1} parent=1 // pred_check
      _
    $region7: #{tpu_custom_call.1} parent=1 // pred_check_branch
      %30 = sbr.rel (0) target = $region9
    $region8: #{tpu_custom_call.1} parent=1 // pred_region
      %s32 = ssub.s32 640, 640
      %33 = vsyncadd [#allocation6], %s32
      %s34 = sshll.u32 [#allocation5], 4
      %s35 = int_to_ptr.vmem [resolvable:$true] %s34
      %40 = dma.hbm_to_vmem [thread:$0]  %s1, 640, %s35, [#allocation6], 128, 128, 8
    $region9: #{tpu_custom_call.1} parent=1 // pred_fallthru
      _
    // Predicated region
    $region10: #{tpu_custom_call.1} parent=1 // pred_check
      _
    $region11: #{tpu_custom_call.1} parent=1 // pred_check_branch
      %42 = sbr.rel (0) target = $region13
    $region12: #{tpu_custom_call.1} parent=1 // pred_region
      %s44 = ssub.s32 20480, 20480
      %45 = vsyncadd [#allocation6], %s44
      %s46 = sshll.u32 [#allocation7], 4
      %s47 = int_to_ptr.vmem [resolvable:$true] %s46
      %52 = dma.hbm_to_vmem [thread:$0]  %s2, 20480, %s47, [#allocation6], 256, 256, 16
    $region13: #{tpu_custom_call.1} parent=1 // pred_fallthru
      _
    // Predicated region
    $region14: #{tpu_custom_call.1} parent=1 // pred_check
      _
    $region15: #{tpu_custom_call.1} parent=1 // pred_check_branch
      %54 = sbr.rel (0) target = $region17
    $region16: #{tpu_custom_call.1} parent=1 // pred_region
      %s56 = ssub.s32 192, 192
      %57 = vsyncadd [#allocation9], %s56
      %s58 = sshll.u32 [#allocation8], 4
      %s59 = int_to_ptr.vmem [resolvable:$true] %s58
      %64 = dma.hbm_to_vmem [thread:$0]  %s3, 192, %s59, [#allocation9], 64, 64, 4
    $region17: #{tpu_custom_call.1} parent=1 // pred_fallthru
      _
    // Predicated region
    $region18: #{tpu_custom_call.1} parent=1 // pred_check
      _
    $region19: #{tpu_custom_call.1} parent=1 // pred_check_branch
      %66 = sbr.rel (0) target = $region21
    $region20: #{tpu_custom_call.1} parent=1 // pred_region
      %s68 = ssub.s32 24576, 24576
      %69 = vsyncadd [#allocation9], %s68
      %s70 = sshll.u32 [#allocation10], 4
      %s71 = int_to_ptr.vmem [resolvable:$true] %s70
      %76 = dma.hbm_to_vmem [thread:$0]  %s4, 24576, %s71, [#allocation9], 256, 256, 16
    $region21: #{tpu_custom_call.1} parent=1 // pred_fallthru
      _
    // Predicated region
    $region22: #{tpu_custom_call.1} parent=1 // pred_check
      _
    $region23: #{tpu_custom_call.1} parent=1 // pred_check_branch
      %78 = sbr.rel (0) target = $region25
    $region24: #{tpu_custom_call.1} parent=1 // pred_region
      %s80 = ssub.s32 8192, 8192
      %81 = vsyncadd [#allocation12], %s80
      %s82 = sshll.u32 [#allocation11], 4
      %s83 = int_to_ptr.vmem [resolvable:$true] %s82
      %88 = dma.hbm_to_vmem [thread:$0]  %s5, 8192, %s83, [#allocation12], 256, 256, 16
    $region25: #{tpu_custom_call.1} parent=1 // pred_fallthru
      _
    // Predicated region
    $region26: #{tpu_custom_call.1} parent=1 // pred_check
      _
    $region27: #{tpu_custom_call.1} parent=1 // pred_check_branch
      %90 = sbr.rel (0) target = $region29
    $region28: #{tpu_custom_call.1} parent=1 // pred_region
      _
    $region29: #{tpu_custom_call.1} parent=1 // pred_fallthru
      _
    // Predicated region
    $region30: #{tpu_custom_call.1} parent=1 // pred_check
      _
    $region31: #{tpu_custom_call.1} parent=1 // pred_check_branch
      %92 = sbr.rel (0) target = $region33
    $region32: #{tpu_custom_call.1} parent=1 // pred_region
      %93 = dma.done [#allocation3], 256
    $region33: #{tpu_custom_call.1} parent=1 // pred_fallthru
      _
    // Predicated region
    $region34: #{tpu_custom_call.1} parent=1 // pred_check
      _
    $region35: #{tpu_custom_call.1} parent=1 // pred_check_branch
      %95 = sbr.rel (0) target = $region37
    $region36: #{tpu_custom_call.1} parent=1 // pred_region
      %96 = dma.done [#allocation6], 640
    $region37: #{tpu_custom_call.1} parent=1 // pred_fallthru
      _
    // Predicated region
    $region38: #{tpu_custom_call.1} parent=1 // pred_check
      _
    $region39: #{tpu_custom_call.1} parent=1 // pred_check_branch
      %98 = sbr.rel (0) target = $region41
    $region40: #{tpu_custom_call.1} parent=1 // pred_region
      %99 = dma.done [#allocation6], 20480
    $region41: #{tpu_custom_call.1} parent=1 // pred_fallthru
      _
    // Predicated region
    $region42: #{tpu_custom_call.1} parent=1 // pred_check
      _
    $region43: #{tpu_custom_call.1} parent=1 // pred_check_branch
      %101 = sbr.rel (0) target = $region45
    $region44: #{tpu_custom_call.1} parent=1 // pred_region
      %102 = dma.done [#allocation9], 192
    $region45: #{tpu_custom_call.1} parent=1 // pred_fallthru
      _
    // Predicated region
    $region46: #{tpu_custom_call.1} parent=1 // pred_check
      _
    $region47: #{tpu_custom_call.1} parent=1 // pred_check_branch
      %104 = sbr.rel (0) target = $region49
    $region48: #{tpu_custom_call.1} parent=1 // pred_region
      %105 = dma.done [#allocation9], 24576
    $region49: #{tpu_custom_call.1} parent=1 // pred_fallthru
      _
    // Predicated region
    $region50: #{tpu_custom_call.1} parent=1 // pred_check
      _
    $region51: #{tpu_custom_call.1} parent=1 // pred_check_branch
      %107 = sbr.rel (0) target = $region53
    $region52: #{tpu_custom_call.1} parent=1 // pred_region
      %108 = dma.done [#allocation12], 8192
    $region53: #{tpu_custom_call.1} parent=1 // pred_fallthru
      _
    %v109 = vld [vmem:[%s6] sm:$0x3f]
    %v110 = vld [vmem:[%s6 + $0x8] sm:$0x3f]
    %v111 = vld [vmem:[#allocation2] sm:$0xff]
    %v112 = vld [vmem:[#allocation2 + $0x8] sm:$0xff]
    %v113 = vld [vmem:[#allocation11] sm:$0xff]
    %v114 = vld [vmem:[#allocation11 + $0x8] sm:$0xff]
    %v115 = vld [vmem:[#allocation11 + $0x10] sm:$0xff]
    %v116 = vld [vmem:[#allocation11 + $0x18] sm:$0xff]
    %v117 = vld [vmem:[#allocation11 + $0x20] sm:$0xff]
    %v118 = vld [vmem:[#allocation11 + $0x28] sm:$0xff]
    %v119 = vld [vmem:[#allocation11 + $0x30] sm:$0xff]
    %v120 = vld [vmem:[#allocation11 + $0x38] sm:$0xff]
    %v121 = vld [vmem:[#allocation11 + $0x40] sm:$0xff]
    %v122 = vld [vmem:[#allocation11 + $0x48] sm:$0xff]
    %v123 = vld [vmem:[#allocation11 + $0x50] sm:$0xff]
    %v124 = vld [vmem:[#allocation11 + $0x58] sm:$0xff]
    %v125 = vld [vmem:[#allocation11 + $0x60] sm:$0xff]
    %v126 = vld [vmem:[#allocation11 + $0x68] sm:$0xff]
    %v127 = vld [vmem:[#allocation11 + $0x70] sm:$0xff]
    %v128 = vld [vmem:[#allocation11 + $0x78] sm:$0xff]
    %v129 = vld [vmem:[#allocation11 + $0x80] sm:$0xff]
    %v130 = vld [vmem:[#allocation11 + $0x88] sm:$0xff]
    %v131 = vld [vmem:[#allocation11 + $0x90] sm:$0xff]
    %v132 = vld [vmem:[#allocation11 + $0x98] sm:$0xff]
    %v133 = vld [vmem:[#allocation11 + $0xa0] sm:$0xff]
    %v134 = vld [vmem:[#allocation11 + $0xa8] sm:$0xff]
    %v135 = vld [vmem:[#allocation11 + $0xb0] sm:$0xff]
    %v136 = vld [vmem:[#allocation11 + $0xb8] sm:$0xff]
    %v137 = vld [vmem:[#allocation11 + $0xc0] sm:$0xff]
    %v138 = vld [vmem:[#allocation11 + $0xc8] sm:$0xff]
    %v139 = vld [vmem:[#allocation11 + $0xd0] sm:$0xff]
    %v140 = vld [vmem:[#allocation11 + $0xd8] sm:$0xff]
    %v141 = vld [vmem:[#allocation11 + $0xe0] sm:$0xff]
    %v142 = vld [vmem:[#allocation11 + $0xe8] sm:$0xff]
    %v143 = vld [vmem:[#allocation11 + $0xf0] sm:$0xff]
    %v144 = vld [vmem:[#allocation11 + $0xf8] sm:$0xff]
    %v145 = vld [vmem:[#allocation11 + $0x100] sm:$0xff]
    %v146 = vld [vmem:[#allocation11 + $0x108] sm:$0xff]
    %v147 = vld [vmem:[#allocation11 + $0x110] sm:$0xff]
    %v148 = vld [vmem:[#allocation11 + $0x118] sm:$0xff]
    %v149 = vld [vmem:[#allocation11 + $0x120] sm:$0xff]
    %v150 = vld [vmem:[#allocation11 + $0x128] sm:$0xff]
    %v151 = vld [vmem:[#allocation11 + $0x130] sm:$0xff]
    %v152 = vld [vmem:[#allocation11 + $0x138] sm:$0xff]
    %v153 = vld [vmem:[#allocation11 + $0x140] sm:$0xff]
    %v154 = vld [vmem:[#allocation11 + $0x148] sm:$0xff]
    %v155 = vld [vmem:[#allocation11 + $0x150] sm:$0xff]
    %v156 = vld [vmem:[#allocation11 + $0x158] sm:$0xff]
    %v157 = vld [vmem:[#allocation11 + $0x160] sm:$0xff]
    %v158 = vld [vmem:[#allocation11 + $0x168] sm:$0xff]
    %v159 = vld [vmem:[#allocation11 + $0x170] sm:$0xff]
    %v160 = vld [vmem:[#allocation11 + $0x178] sm:$0xff]
    %v161 = vld [vmem:[#allocation11 + $0x180] sm:$0xff]
    %v162 = vld [vmem:[#allocation11 + $0x188] sm:$0xff]
    %v163 = vld [vmem:[#allocation11 + $0x190] sm:$0xff]
    %v164 = vld [vmem:[#allocation11 + $0x198] sm:$0xff]
    %v165 = vld [vmem:[#allocation11 + $0x1a0] sm:$0xff]
    %v166 = vld [vmem:[#allocation11 + $0x1a8] sm:$0xff]
    %v167 = vld [vmem:[#allocation11 + $0x1b0] sm:$0xff]
    %v168 = vld [vmem:[#allocation11 + $0x1b8] sm:$0xff]
    %v169 = vld [vmem:[#allocation11 + $0x1c0] sm:$0xff]
    %v170 = vld [vmem:[#allocation11 + $0x1c8] sm:$0xff]
    %v171 = vld [vmem:[#allocation11 + $0x1d0] sm:$0xff]
    %v172 = vld [vmem:[#allocation11 + $0x1d8] sm:$0xff]
    %v173 = vld [vmem:[#allocation11 + $0x1e0] sm:$0xff]
    %v174 = vld [vmem:[#allocation11 + $0x1e8] sm:$0xff]
    %v175 = vld [vmem:[#allocation11 + $0x1f0] sm:$0xff]
    %v176 = vld [vmem:[#allocation11 + $0x1f8] sm:$0xff]
    %v177 = vld [vmem:[#allocation5] sm:$0xff]
    %vm178 = vcmask 130048
    %v180 = vsel %vm178, %v177, 0
    %182 = vmatprep.subr.mxu0 0.0
    %183 = vmatpush1.msra.mxu0 %v111
    %184 = vmatprep.subr.mxu0 0.0
    %185 = vmatpush1.msra.mxu0 %v112
    %186 = vmatprep.subr.mxu0 0.0
    %187 = vmatpush1.msra.mxu0 0.0
    %188 = vmatprep.subr.mxu0 0.0
    %189 = vmatpush1.msra.mxu0 0.0
    %190 = vmatprep.subr.mxu0 0.0
    %191 = vmatpush1.msra.mxu0 0.0
    %192 = vmatprep.subr.mxu0 0.0
    %193 = vmatpush1.msra.mxu0 0.0
    %194 = vmatprep.subr.mxu0 0.0
    %195 = vmatpush1.msra.mxu0 0.0
    %196 = vmatprep.subr.mxu0 0.0
    %197 = vmatpush1.msra.mxu0 0.0
    %198 = vmatprep.subr.mxu0 0.0
    %199 = vmatpush1.msra.mxu0 0.0
    %200 = vmatprep.subr.mxu0 0.0
    %201 = vmatpush1.msra.mxu0 0.0
    %202 = vmatprep.subr.mxu0 0.0
    %203 = vmatpush1.msra.mxu0 0.0
    %204 = vmatprep.subr.mxu0 0.0
    %205 = vmatpush1.msra.mxu0 0.0
    %206 = vmatprep.subr.mxu0 0.0
    %207 = vmatpush1.msra.mxu0 0.0
    %208 = vmatprep.subr.mxu0 0.0
    %209 = vmatpush1.msra.mxu0 0.0
    %210 = vmatprep.subr.mxu0 0.0
    %211 = vmatpush1.msra.mxu0 0.0
    %212 = vmatprep.subr.mxu0 0.0
    %213 = vmatpush1.msra.mxu0 0.0
    %214 = vmatprep.subr.mxu0 0.0
    %215 = vmatpush1.msra.mxu0 0.0
    %216 = vmatprep.subr.mxu0 0.0
    %217 = vmatpush1.msra.mxu0 0.0
    %218 = vmatprep.subr.mxu0 0.0
    %219 = vmatpush1.msra.mxu0 0.0
    %220 = vmatprep.subr.mxu0 0.0
    %221 = vmatpush1.msra.mxu0 0.0
    %222 = vmatprep.subr.mxu0 0.0
    %223 = vmatpush1.msra.mxu0 0.0
    %224 = vmatprep.subr.mxu0 0.0
    %225 = vmatpush1.msra.mxu0 0.0
    %226 = vmatprep.subr.mxu0 0.0
    %227 = vmatpush1.msra.mxu0 0.0
    %228 = vmatprep.subr.mxu0 0.0
    %229 = vmatpush1.msra.mxu0 0.0
    %230 = vmatprep.subr.mxu0 0.0
    %231 = vmatpush1.msra.mxu0 0.0
    %232 = vmatprep.subr.mxu0 0.0
    %233 = vmatpush1.msra.mxu0 0.0
    %234 = vmatprep.subr.mxu0 0.0
    %235 = vmatpush1.msra.mxu0 0.0
    %236 = vmatprep.subr.mxu0 0.0
    %237 = vmatpush1.msra.mxu0 0.0
    %238 = vmatprep.subr.mxu0 0.0
    %239 = vmatpush1.msra.mxu0 0.0
    %240 = vmatprep.subr.mxu0 0.0
    %241 = vmatpush1.msra.mxu0 0.0
    %242 = vmatprep.subr.mxu0 0.0
    %243 = vmatpush1.msra.mxu0 0.0
    %244 = vmatprep.subr.mxu0 0.0
    %245 = vmatpush1.msra.mxu0 0.0
    %246 = vmatprep.mubr.f32.mxu0 0.0
    %247 = vmatmul.mubr.f32.gmra.mrb[0].mxu0 %v180
    %v248 = vpop.f32.mrb[0].mxu0
    %v249 = vadd.f32 0.0, %v248
    %v250 = vpop.f32.mrb[0].mxu0
    %251 = vdwg.mxu0
    %v252 = vld [vmem:[#allocation7] sm:$0xff]
    %v253 = vld [vmem:[#allocation7 + $0x8] sm:$0xff]
    %v254 = vld [vmem:[#allocation7 + $0x10] sm:$0xff]
    %v255 = vld [vmem:[#allocation7 + $0x18] sm:$0xff]
    %v256 = vld [vmem:[#allocation7 + $0x20] sm:$0xff]
    %v257 = vld [vmem:[#allocation7 + $0x28] sm:$0xff]
    %v258 = vld [vmem:[#allocation7 + $0x30] sm:$0xff]
    %v259 = vld [vmem:[#allocation7 + $0x38] sm:$0xff]
    %v260 = vld [vmem:[#allocation7 + $0x40] sm:$0xff]
    %v261 = vld [vmem:[#allocation7 + $0x48] sm:$0xff]
    %v262 = vld [vmem:[#allocation7 + $0x50] sm:$0xff]
    %v263 = vld [vmem:[#allocation7 + $0x58] sm:$0xff]
    %v264 = vld [vmem:[#allocation7 + $0x60] sm:$0xff]
    %v265 = vld [vmem:[#allocation7 + $0x68] sm:$0xff]
    %v266 = vld [vmem:[#allocation7 + $0x70] sm:$0xff]
    %v267 = vld [vmem:[#allocation7 + $0x78] sm:$0xff]
    %v268 = vld [vmem:[#allocation7 + $0x80] sm:$0xff]
    %v269 = vld [vmem:[#allocation7 + $0x88] sm:$0xff]
    %v270 = vld [vmem:[#allocation7 + $0x90] sm:$0xff]
    %v271 = vld [vmem:[#allocation7 + $0x98] sm:$0xff]
    %v272 = vld [vmem:[#allocation7 + $0xa0] sm:$0xff]
    %v273 = vld [vmem:[#allocation7 + $0xa8] sm:$0xff]
    %v274 = vld [vmem:[#allocation7 + $0xb0] sm:$0xff]
    %v275 = vld [vmem:[#allocation7 + $0xb8] sm:$0xff]
    %v276 = vld [vmem:[#allocation7 + $0xc0] sm:$0xff]
    %v277 = vld [vmem:[#allocation7 + $0xc8] sm:$0xff]
    %v278 = vld [vmem:[#allocation7 + $0xd0] sm:$0xff]
    %v279 = vld [vmem:[#allocation7 + $0xd8] sm:$0xff]
    %v280 = vld [vmem:[#allocation7 + $0xe0] sm:$0xff]
    %v281 = vld [vmem:[#allocation7 + $0xe8] sm:$0xff]
    %v282 = vld [vmem:[#allocation7 + $0xf0] sm:$0xff]
    %v283 = vld [vmem:[#allocation7 + $0xf8] sm:$0xff]
    %s284 = scalar_lea.vmem [#allocation5], 8
    %v285 = vld [vmem:[%s284] sm:$0xff]
    %v287 = vsel %vm178, %v285, 0
    %289 = vmatprep.subr.mxu0 0.0
    %290 = vmatpush1.msra.mxu0 %v111
    %291 = vmatprep.subr.mxu0 0.0
    %292 = vmatpush1.msra.mxu0 %v112
    %293 = vmatprep.subr.mxu0 0.0
    %294 = vmatpush1.msra.mxu0 0.0
    %295 = vmatprep.subr.mxu0 0.0
    %296 = vmatpush1.msra.mxu0 0.0
    %297 = vmatprep.subr.mxu0 0.0
    %298 = vmatpush1.msra.mxu0 0.0
    %299 = vmatprep.subr.mxu0 0.0
    %300 = vmatpush1.msra.mxu0 0.0
    %301 = vmatprep.subr.mxu0 0.0
    %302 = vmatpush1.msra.mxu0 0.0
    %303 = vmatprep.subr.mxu0 0.0
    %304 = vmatpush1.msra.mxu0 0.0
    %305 = vmatprep.subr.mxu0 0.0
    %306 = vmatpush1.msra.mxu0 0.0
    %307 = vmatprep.subr.mxu0 0.0
    %308 = vmatpush1.msra.mxu0 0.0
    %309 = vmatprep.subr.mxu0 0.0
    %310 = vmatpush1.msra.mxu0 0.0
    %311 = vmatprep.subr.mxu0 0.0
    %312 = vmatpush1.msra.mxu0 0.0
    %313 = vmatprep.subr.mxu0 0.0
    %314 = vmatpush1.msra.mxu0 0.0
    %315 = vmatprep.subr.mxu0 0.0
    %316 = vmatpush1.msra.mxu0 0.0
    %317 = vmatprep.subr.mxu0 0.0
    %318 = vmatpush1.msra.mxu0 0.0
    %319 = vmatprep.subr.mxu0 0.0
    %320 = vmatpush1.msra.mxu0 0.0
    %321 = vmatprep.subr.mxu0 0.0
    %322 = vmatpush1.msra.mxu0 0.0
    %323 = vmatprep.subr.mxu0 0.0
    %324 = vmatpush1.msra.mxu0 0.0
    %325 = vmatprep.subr.mxu0 0.0
    %326 = vmatpush1.msra.mxu0 0.0
    %327 = vmatprep.subr.mxu0 0.0
    %328 = vmatpush1.msra.mxu0 0.0
    %329 = vmatprep.subr.mxu0 0.0
    %330 = vmatpush1.msra.mxu0 0.0
    %331 = vmatprep.subr.mxu0 0.0
    %332 = vmatpush1.msra.mxu0 0.0
    %333 = vmatprep.subr.mxu0 0.0
    %334 = vmatpush1.msra.mxu0 0.0
    %335 = vmatprep.subr.mxu0 0.0
    %336 = vmatpush1.msra.mxu0 0.0
    %337 = vmatprep.subr.mxu0 0.0
    %338 = vmatpush1.msra.mxu0 0.0
    %339 = vmatprep.subr.mxu0 0.0
    %340 = vmatpush1.msra.mxu0 0.0
    %341 = vmatprep.subr.mxu0 0.0
    %342 = vmatpush1.msra.mxu0 0.0
    %343 = vmatprep.subr.mxu0 0.0
    %344 = vmatpush1.msra.mxu0 0.0
    %345 = vmatprep.subr.mxu0 0.0
    %346 = vmatpush1.msra.mxu0 0.0
    %347 = vmatprep.subr.mxu0 0.0
    %348 = vmatpush1.msra.mxu0 0.0
    %349 = vmatprep.subr.mxu0 0.0
    %350 = vmatpush1.msra.mxu0 0.0
    %351 = vmatprep.subr.mxu0 0.0
    %352 = vmatpush1.msra.mxu0 0.0
    %353 = vmatprep.mubr.f32.mxu0 0.0
    %354 = vmatmul.mubr.f32.gmra.mrb[0].mxu0 %v287
    %v355 = vpop.f32.mrb[0].mxu0
    %v356 = vadd.f32 0.0, %v355
    %v357 = vpop.f32.mrb[0].mxu0
    %358 = vdwg.mxu0
    %s359 = scalar_lea.vmem [#allocation7], 256
    %v360 = vld [vmem:[%s359] sm:$0xff]
    %v361 = vld [vmem:[%s359 + $0x8] sm:$0xff]
    %v362 = vld [vmem:[%s359 + $0x10] sm:$0xff]
    %v363 = vld [vmem:[%s359 + $0x18] sm:$0xff]
    %v364 = vld [vmem:[%s359 + $0x20] sm:$0xff]
    %v365 = vld [vmem:[%s359 + $0x28] sm:$0xff]
    %v366 = vld [vmem:[%s359 + $0x30] sm:$0xff]
    %v367 = vld [vmem:[%s359 + $0x38] sm:$0xff]
    %v368 = vld [vmem:[%s359 + $0x40] sm:$0xff]
    %v369 = vld [vmem:[%s359 + $0x48] sm:$0xff]
    %v370 = vld [vmem:[%s359 + $0x50] sm:$0xff]
    %v371 = vld [vmem:[%s359 + $0x58] sm:$0xff]
    %v372 = vld [vmem:[%s359 + $0x60] sm:$0xff]
    %v373 = vld [vmem:[%s359 + $0x68] sm:$0xff]
    %v374 = vld [vmem:[%s359 + $0x70] sm:$0xff]
    %v375 = vld [vmem:[%s359 + $0x78] sm:$0xff]
    %v376 = vld [vmem:[%s359 + $0x80] sm:$0xff]
    %v377 = vld [vmem:[%s359 + $0x88] sm:$0xff]
    %v378 = vld [vmem:[%s359 + $0x90] sm:$0xff]
    %v379 = vld [vmem:[%s359 + $0x98] sm:$0xff]
    %v380 = vld [vmem:[%s359 + $0xa0] sm:$0xff]
    %v381 = vld [vmem:[%s359 + $0xa8] sm:$0xff]
    %v382 = vld [vmem:[%s359 + $0xb0] sm:$0xff]
    %v383 = vld [vmem:[%s359 + $0xb8] sm:$0xff]
    %v384 = vld [vmem:[%s359 + $0xc0] sm:$0xff]
    %v385 = vld [vmem:[%s359 + $0xc8] sm:$0xff]
    %v386 = vld [vmem:[%s359 + $0xd0] sm:$0xff]
    %v387 = vld [vmem:[%s359 + $0xd8] sm:$0xff]
    %v388 = vld [vmem:[%s359 + $0xe0] sm:$0xff]
    %v389 = vld [vmem:[%s359 + $0xe8] sm:$0xff]
    %v390 = vld [vmem:[%s359 + $0xf0] sm:$0xff]
    %v391 = vld [vmem:[%s359 + $0xf8] sm:$0xff]
    %392 = vmatprep.subr.mxu0 %v361
    %393 = vmatpush1.msra.mxu0 %v360
    %394 = vmatprep.subr.mxu0 %v363
    %395 = vmatpush1.msra.mxu0 %v362
    %396 = vmatprep.subr.mxu0 %v365
    %397 = vmatpush1.msra.mxu0 %v364
    %398 = vmatprep.subr.mxu0 %v367
    %399 = vmatpush1.msra.mxu0 %v366
    %400 = vmatprep.subr.mxu0 %v369
    %401 = vmatpush1.msra.mxu0 %v368
    %402 = vmatprep.subr.mxu0 %v371
    %403 = vmatpush1.msra.mxu0 %v370
    %404 = vmatprep.subr.mxu0 %v373
    %405 = vmatpush1.msra.mxu0 %v372
    %406 = vmatprep.subr.mxu0 %v375
    %407 = vmatpush1.msra.mxu0 %v374
    %408 = vmatprep.subr.mxu0 %v377
    %409 = vmatpush1.msra.mxu0 %v376
    %410 = vmatprep.subr.mxu0 %v379
    %411 = vmatpush1.msra.mxu0 %v378
    %412 = vmatprep.subr.mxu0 %v381
    %413 = vmatpush1.msra.mxu0 %v380
    %414 = vmatprep.subr.mxu0 %v383
    %415 = vmatpush1.msra.mxu0 %v382
    %416 = vmatprep.subr.mxu0 %v385
    %417 = vmatpush1.msra.mxu0 %v384
    %418 = vmatprep.subr.mxu0 %v387
    %419 = vmatpush1.msra.mxu0 %v386
    %420 = vmatprep.subr.mxu0 %v389
    %421 = vmatpush1.msra.mxu0 %v388
    %422 = vmatprep.subr.mxu0 %v391
    %423 = vmatpush1.msra.mxu0 %v390
    %424 = vmatprep.subr.mxu0 0.0
    %425 = vmatpush1.msra.mxu0 0.0
    %426 = vmatprep.subr.mxu0 0.0
    %427 = vmatpush1.msra.mxu0 0.0
    %428 = vmatprep.subr.mxu0 0.0
    %429 = vmatpush1.msra.mxu0 0.0
    %430 = vmatprep.subr.mxu0 0.0
    %431 = vmatpush1.msra.mxu0 0.0
    %432 = vmatprep.subr.mxu0 0.0
    %433 = vmatpush1.msra.mxu0 0.0
    %434 = vmatprep.subr.mxu0 0.0
    %435 = vmatpush1.msra.mxu0 0.0
    %436 = vmatprep.subr.mxu0 0.0
    %437 = vmatpush1.msra.mxu0 0.0
    %438 = vmatprep.subr.mxu0 0.0
    %439 = vmatpush1.msra.mxu0 0.0
    %440 = vmatprep.subr.mxu0 0.0
    %441 = vmatpush1.msra.mxu0 0.0
    %442 = vmatprep.subr.mxu0 0.0
    %443 = vmatpush1.msra.mxu0 0.0
    %444 = vmatprep.subr.mxu0 0.0
    %445 = vmatpush1.msra.mxu0 0.0
    %446 = vmatprep.subr.mxu0 0.0
    %447 = vmatpush1.msra.mxu0 0.0
    %448 = vmatprep.subr.mxu0 0.0
    %449 = vmatpush1.msra.mxu0 0.0
    %450 = vmatprep.subr.mxu0 0.0
    %451 = vmatpush1.msra.mxu0 0.0
    %452 = vmatprep.subr.mxu0 0.0
    %453 = vmatpush1.msra.mxu0 0.0
    %454 = vmatprep.subr.mxu0 0.0
    %455 = vmatpush1.msra.mxu0 0.0
    %456 = vmatprep.mubr.f32.mxu0 0.0
    %457 = vmatmul.mubr.f32.gmra.mrb[0].mxu0 %v356
    %v458 = vpop.f32.mrb[0].mxu0
    %v459 = vadd.f32 0.0, %v458
    %v460 = vpop.f32.mrb[0].mxu0
    %v461 = vadd.f32 0.0, %v460
    %462 = vdwg.mxu0
    %463 = vmatprep.subr.mxu0 %v253
    %464 = vmatpush1.msra.mxu0 %v252
    %465 = vmatprep.subr.mxu0 %v255
    %466 = vmatpush1.msra.mxu0 %v254
    %467 = vmatprep.subr.mxu0 %v257
    %468 = vmatpush1.msra.mxu0 %v256
    %469 = vmatprep.subr.mxu0 %v259
    %470 = vmatpush1.msra.mxu0 %v258
    %471 = vmatprep.subr.mxu0 %v261
    %472 = vmatpush1.msra.mxu0 %v260
    %473 = vmatprep.subr.mxu0 %v263
    %474 = vmatpush1.msra.mxu0 %v262
    %475 = vmatprep.subr.mxu0 %v265
    %476 = vmatpush1.msra.mxu0 %v264
    %477 = vmatprep.subr.mxu0 %v267
    %478 = vmatpush1.msra.mxu0 %v266
    %479 = vmatprep.subr.mxu0 %v269
    %480 = vmatpush1.msra.mxu0 %v268
    %481 = vmatprep.subr.mxu0 %v271
    %482 = vmatpush1.msra.mxu0 %v270
    %483 = vmatprep.subr.mxu0 %v273
    %484 = vmatpush1.msra.mxu0 %v272
    %485 = vmatprep.subr.mxu0 %v275
    %486 = vmatpush1.msra.mxu0 %v274
    %487 = vmatprep.subr.mxu0 %v277
    %488 = vmatpush1.msra.mxu0 %v276
    %489 = vmatprep.subr.mxu0 %v279
    %490 = vmatpush1.msra.mxu0 %v278
    %491 = vmatprep.subr.mxu0 %v281
    %492 = vmatpush1.msra.mxu0 %v280
    %493 = vmatprep.subr.mxu0 %v283
    %494 = vmatpush1.msra.mxu0 %v282
    %495 = vmatprep.subr.mxu0 0.0
    %496 = vmatpush1.msra.mxu0 0.0
    %497 = vmatprep.subr.mxu0 0.0
    %498 = vmatpush1.msra.mxu0 0.0
    %499 = vmatprep.subr.mxu0 0.0
    %500 = vmatpush1.msra.mxu0 0.0
    %501 = vmatprep.subr.mxu0 0.0
    %502 = vmatpush1.msra.mxu0 0.0
    %503 = vmatprep.subr.mxu0 0.0
    %504 = vmatpush1.msra.mxu0 0.0
    %505 = vmatprep.subr.mxu0 0.0
    %506 = vmatpush1.msra.mxu0 0.0
    %507 = vmatprep.subr.mxu0 0.0
    %508 = vmatpush1.msra.mxu0 0.0
    %509 = vmatprep.subr.mxu0 0.0
    %510 = vmatpush1.msra.mxu0 0.0
    %511 = vmatprep.subr.mxu0 0.0
    %512 = vmatpush1.msra.mxu0 0.0
    %513 = vmatprep.subr.mxu0 0.0
    %514 = vmatpush1.msra.mxu0 0.0
    %515 = vmatprep.subr.mxu0 0.0
    %516 = vmatpush1.msra.mxu0 0.0
    %517 = vmatprep.subr.mxu0 0.0
    %518 = vmatpush1.msra.mxu0 0.0
    %519 = vmatprep.subr.mxu0 0.0
    %520 = vmatpush1.msra.mxu0 0.0
    %521 = vmatprep.subr.mxu0 0.0
    %522 = vmatpush1.msra.mxu0 0.0
    %523 = vmatprep.subr.mxu0 0.0
    %524 = vmatpush1.msra.mxu0 0.0
    %525 = vmatprep.subr.mxu0 0.0
    %526 = vmatpush1.msra.mxu0 0.0
    %527 = vmatprep.mubr.f32.mxu0 0.0
    %528 = vmatmul.mubr.f32.gmra.mrb[0].mxu0 %v249
    %v529 = vpop.f32.mrb[0].mxu0
    %v530 = vadd.f32 %v459, %v529
    %v531 = vpop.f32.mrb[0].mxu0
    %v532 = vadd.f32 %v461, %v531
    %533 = vdwg.mxu0
    %s534 = scalar_lea.vmem [#allocation5], 16
    %v535 = vld [vmem:[%s534] sm:$0xff]
    %v537 = vsel %vm178, %v535, 0
    %539 = vmatprep.subr.mxu0 0.0
    %540 = vmatpush1.msra.mxu0 %v111
    %541 = vmatprep.subr.mxu0 0.0
    %542 = vmatpush1.msra.mxu0 %v112
    %543 = vmatprep.subr.mxu0 0.0
    %544 = vmatpush1.msra.mxu0 0.0
    %545 = vmatprep.subr.mxu0 0.0
    %546 = vmatpush1.msra.mxu0 0.0
    %547 = vmatprep.subr.mxu0 0.0
    %548 = vmatpush1.msra.mxu0 0.0
    %549 = vmatprep.subr.mxu0 0.0
    %550 = vmatpush1.msra.mxu0 0.0
    %551 = vmatprep.subr.mxu0 0.0
    %552 = vmatpush1.msra.mxu0 0.0
    %553 = vmatprep.subr.mxu0 0.0
    %554 = vmatpush1.msra.mxu0 0.0
    %555 = vmatprep.subr.mxu0 0.0
    %556 = vmatpush1.msra.mxu0 0.0
    %557 = vmatprep.subr.mxu0 0.0
    %558 = vmatpush1.msra.mxu0 0.0
    %559 = vmatprep.subr.mxu0 0.0
    %560 = vmatpush1.msra.mxu0 0.0
    %561 = vmatprep.subr.mxu0 0.0
    %562 = vmatpush1.msra.mxu0 0.0
    %563 = vmatprep.subr.mxu0 0.0
    %564 = vmatpush1.msra.mxu0 0.0
    %565 = vmatprep.subr.mxu0 0.0
    %566 = vmatpush1.msra.mxu0 0.0
    %567 = vmatprep.subr.mxu0 0.0
    %568 = vmatpush1.msra.mxu0 0.0
    %569 = vmatprep.subr.mxu0 0.0
    %570 = vmatpush1.msra.mxu0 0.0
    %571 = vmatprep.subr.mxu0 0.0
    %572 = vmatpush1.msra.mxu0 0.0
    %573 = vmatprep.subr.mxu0 0.0
    %574 = vmatpush1.msra.mxu0 0.0
    %575 = vmatprep.subr.mxu0 0.0
    %576 = vmatpush1.msra.mxu0 0.0
    %577 = vmatprep.subr.mxu0 0.0
    %578 = vmatpush1.msra.mxu0 0.0
    %579 = vmatprep.subr.mxu0 0.0
    %580 = vmatpush1.msra.mxu0 0.0
    %581 = vmatprep.subr.mxu0 0.0
    %582 = vmatpush1.msra.mxu0 0.0
    %583 = vmatprep.subr.mxu0 0.0
    %584 = vmatpush1.msra.mxu0 0.0
    %585 = vmatprep.subr.mxu0 0.0
    %586 = vmatpush1.msra.mxu0 0.0
    %587 = vmatprep.subr.mxu0 0.0
    %588 = vmatpush1.msra.mxu0 0.0
    %589 = vmatprep.subr.mxu0 0.0
    %590 = vmatpush1.msra.mxu0 0.0
    %591 = vmatprep.subr.mxu0 0.0
    %592 = vmatpush1.msra.mxu0 0.0
    %593 = vmatprep.subr.mxu0 0.0
    %594 = vmatpush1.msra.mxu0 0.0
    %595 = vmatprep.subr.mxu0 0.0
    %596 = vmatpush1.msra.mxu0 0.0
    %597 = vmatprep.subr.mxu0 0.0
    %598 = vmatpush1.msra.mxu0 0.0
    %599 = vmatprep.subr.mxu0 0.0
    %600 = vmatpush1.msra.mxu0 0.0
    %601 = vmatprep.subr.mxu0 0.0
    %602 = vmatpush1.msra.mxu0 0.0
    %603 = vmatprep.mubr.f32.mxu0 0.0
    %604 = vmatmul.mubr.f32.gmra.mrb[0].mxu0 %v537
    %v605 = vpop.f32.mrb[0].mxu0
    %v606 = vadd.f32 0.0, %v605
    %v607 = vpop.f32.mrb[0].mxu0
    %608 = vdwg.mxu0
    %s609 = scalar_lea.vmem [#allocation7], 512
    %v610 = vld [vmem:[%s609] sm:$0xff]
    %v611 = vld [vmem:[%s609 + $0x8] sm:$0xff]
    %v612 = vld [vmem:[%s609 + $0x10] sm:$0xff]
    %v613 = vld [vmem:[%s609 + $0x18] sm:$0xff]
    %v614 = vld [vmem:[%s609 + $0x20] sm:$0xff]
    %v615 = vld [vmem:[%s609 + $0x28] sm:$0xff]
    %v616 = vld [vmem:[%s609 + $0x30] sm:$0xff]
    %v617 = vld [vmem:[%s609 + $0x38] sm:$0xff]
    %v618 = vld [vmem:[%s609 + $0x40] sm:$0xff]
    %v619 = vld [vmem:[%s609 + $0x48] sm:$0xff]
    %v620 = vld [vmem:[%s609 + $0x50] sm:$0xff]
    %v621 = vld [vmem:[%s609 + $0x58] sm:$0xff]
    %v622 = vld [vmem:[%s609 + $0x60] sm:$0xff]
    %v623 = vld [vmem:[%s609 + $0x68] sm:$0xff]
    %v624 = vld [vmem:[%s609 + $0x70] sm:$0xff]
    %v625 = vld [vmem:[%s609 + $0x78] sm:$0xff]
    %v626 = vld [vmem:[%s609 + $0x80] sm:$0xff]
    %v627 = vld [vmem:[%s609 + $0x88] sm:$0xff]
    %v628 = vld [vmem:[%s609 + $0x90] sm:$0xff]
    %v629 = vld [vmem:[%s609 + $0x98] sm:$0xff]
    %v630 = vld [vmem:[%s609 + $0xa0] sm:$0xff]
    %v631 = vld [vmem:[%s609 + $0xa8] sm:$0xff]
    %v632 = vld [vmem:[%s609 + $0xb0] sm:$0xff]
    %v633 = vld [vmem:[%s609 + $0xb8] sm:$0xff]
    %v634 = vld [vmem:[%s609 + $0xc0] sm:$0xff]
    %v635 = vld [vmem:[%s609 + $0xc8] sm:$0xff]
    %v636 = vld [vmem:[%s609 + $0xd0] sm:$0xff]
    %v637 = vld [vmem:[%s609 + $0xd8] sm:$0xff]
    %v638 = vld [vmem:[%s609 + $0xe0] sm:$0xff]
    %v639 = vld [vmem:[%s609 + $0xe8] sm:$0xff]
    %v640 = vld [vmem:[%s609 + $0xf0] sm:$0xff]
    %v641 = vld [vmem:[%s609 + $0xf8] sm:$0xff]
    %642 = vmatprep.subr.mxu0 %v611
    %643 = vmatpush1.msra.mxu0 %v610
    %644 = vmatprep.subr.mxu0 %v613
    %645 = vmatpush1.msra.mxu0 %v612
    %646 = vmatprep.subr.mxu0 %v615
    %647 = vmatpush1.msra.mxu0 %v614
    %648 = vmatprep.subr.mxu0 %v617
    %649 = vmatpush1.msra.mxu0 %v616
    %650 = vmatprep.subr.mxu0 %v619
    %651 = vmatpush1.msra.mxu0 %v618
    %652 = vmatprep.subr.mxu0 %v621
    %653 = vmatpush1.msra.mxu0 %v620
    %654 = vmatprep.subr.mxu0 %v623
    %655 = vmatpush1.msra.mxu0 %v622
    %656 = vmatprep.subr.mxu0 %v625
    %657 = vmatpush1.msra.mxu0 %v624
    %658 = vmatprep.subr.mxu0 %v627
    %659 = vmatpush1.msra.mxu0 %v626
    %660 = vmatprep.subr.mxu0 %v629
    %661 = vmatpush1.msra.mxu0 %v628
    %662 = vmatprep.subr.mxu0 %v631
    %663 = vmatpush1.msra.mxu0 %v630
    %664 = vmatprep.subr.mxu0 %v633
    %665 = vmatpush1.msra.mxu0 %v632
    %666 = vmatprep.subr.mxu0 %v635
    %667 = vmatpush1.msra.mxu0 %v634
    %668 = vmatprep.subr.mxu0 %v637
    %669 = vmatpush1.msra.mxu0 %v636
    %670 = vmatprep.subr.mxu0 %v639
    %671 = vmatpush1.msra.mxu0 %v638
    %672 = vmatprep.subr.mxu0 %v641
    %673 = vmatpush1.msra.mxu0 %v640
    %674 = vmatprep.subr.mxu0 0.0
    %675 = vmatpush1.msra.mxu0 0.0
    %676 = vmatprep.subr.mxu0 0.0
    %677 = vmatpush1.msra.mxu0 0.0
    %678 = vmatprep.subr.mxu0 0.0
    %679 = vmatpush1.msra.mxu0 0.0
    %680 = vmatprep.subr.mxu0 0.0
    %681 = vmatpush1.msra.mxu0 0.0
    %682 = vmatprep.subr.mxu0 0.0
    %683 = vmatpush1.msra.mxu0 0.0
    %684 = vmatprep.subr.mxu0 0.0
    %685 = vmatpush1.msra.mxu0 0.0
    %686 = vmatprep.subr.mxu0 0.0
    %687 = vmatpush1.msra.mxu0 0.0
    %688 = vmatprep.subr.mxu0 0.0
    %689 = vmatpush1.msra.mxu0 0.0
    %690 = vmatprep.subr.mxu0 0.0
    %691 = vmatpush1.msra.mxu0 0.0
    %692 = vmatprep.subr.mxu0 0.0
    %693 = vmatpush1.msra.mxu0 0.0
    %694 = vmatprep.subr.mxu0 0.0
    %695 = vmatpush1.msra.mxu0 0.0
    %696 = vmatprep.subr.mxu0 0.0
    %697 = vmatpush1.msra.mxu0 0.0
    %698 = vmatprep.subr.mxu0 0.0
    %699 = vmatpush1.msra.mxu0 0.0
    %700 = vmatprep.subr.mxu0 0.0
    %701 = vmatpush1.msra.mxu0 0.0
    %702 = vmatprep.subr.mxu0 0.0
    %703 = vmatpush1.msra.mxu0 0.0
    %704 = vmatprep.subr.mxu0 0.0
    %705 = vmatpush1.msra.mxu0 0.0
    %706 = vmatprep.mubr.f32.mxu0 0.0
    %707 = vmatmul.mubr.f32.gmra.mrb[0].mxu0 %v606
    %v708 = vpop.f32.mrb[0].mxu0
    %v709 = vadd.f32 0.0, %v708
    %v710 = vpop.f32.mrb[0].mxu0
    %v711 = vadd.f32 0.0, %v710
    %712 = vdwg.mxu0
    %v713 = vadd.f32 %v530, %v709
    %v714 = vadd.f32 %v532, %v711
    %s715 = scalar_lea.vmem [#allocation5], 24
    %v716 = vld [vmem:[%s715] sm:$0xff]
    %v718 = vsel %vm178, %v716, 0
    %720 = vmatprep.subr.mxu0 0.0
    %721 = vmatpush1.msra.mxu0 %v111
    %722 = vmatprep.subr.mxu0 0.0
    %723 = vmatpush1.msra.mxu0 %v112
    %724 = vmatprep.subr.mxu0 0.0
    %725 = vmatpush1.msra.mxu0 0.0
    %726 = vmatprep.subr.mxu0 0.0
    %727 = vmatpush1.msra.mxu0 0.0
    %728 = vmatprep.subr.mxu0 0.0
    %729 = vmatpush1.msra.mxu0 0.0
    %730 = vmatprep.subr.mxu0 0.0
    %731 = vmatpush1.msra.mxu0 0.0
    %732 = vmatprep.subr.mxu0 0.0
    %733 = vmatpush1.msra.mxu0 0.0
    %734 = vmatprep.subr.mxu0 0.0
    %735 = vmatpush1.msra.mxu0 0.0
    %736 = vmatprep.subr.mxu0 0.0
    %737 = vmatpush1.msra.mxu0 0.0
    %738 = vmatprep.subr.mxu0 0.0
    %739 = vmatpush1.msra.mxu0 0.0
    %740 = vmatprep.subr.mxu0 0.0
    %741 = vmatpush1.msra.mxu0 0.0
    %742 = vmatprep.subr.mxu0 0.0
    %743 = vmatpush1.msra.mxu0 0.0
    %744 = vmatprep.subr.mxu0 0.0
    %745 = vmatpush1.msra.mxu0 0.0
    %746 = vmatprep.subr.mxu0 0.0
    %747 = vmatpush1.msra.mxu0 0.0
    %748 = vmatprep.subr.mxu0 0.0
    %749 = vmatpush1.msra.mxu0 0.0
    %750 = vmatprep.subr.mxu0 0.0
    %751 = vmatpush1.msra.mxu0 0.0
    %752 = vmatprep.subr.mxu0 0.0
    %753 = vmatpush1.msra.mxu0 0.0
    %754 = vmatprep.subr.mxu0 0.0
    %755 = vmatpush1.msra.mxu0 0.0
    %756 = vmatprep.subr.mxu0 0.0
    %757 = vmatpush1.msra.mxu0 0.0
    %758 = vmatprep.subr.mxu0 0.0
    %759 = vmatpush1.msra.mxu0 0.0
    %760 = vmatprep.subr.mxu0 0.0
    %761 = vmatpush1.msra.mxu0 0.0
    %762 = vmatprep.subr.mxu0 0.0
    %763 = vmatpush1.msra.mxu0 0.0
    %764 = vmatprep.subr.mxu0 0.0
    %765 = vmatpush1.msra.mxu0 0.0
    %766 = vmatprep.subr.mxu0 0.0
    %767 = vmatpush1.msra.mxu0 0.0
    %768 = vmatprep.subr.mxu0 0.0
    %769 = vmatpush1.msra.mxu0 0.0
    %770 = vmatprep.subr.mxu0 0.0
    %771 = vmatpush1.msra.mxu0 0.0
    %772 = vmatprep.subr.mxu0 0.0
    %773 = vmatpush1.msra.mxu0 0.0
    %774 = vmatprep.subr.mxu0 0.0
    %775 = vmatpush1.msra.mxu0 0.0
    %776 = vmatprep.subr.mxu0 0.0
    %777 = vmatpush1.msra.mxu0 0.0
    %778 = vmatprep.subr.mxu0 0.0
    %779 = vmatpush1.msra.mxu0 0.0
    %780 = vmatprep.subr.mxu0 0.0
    %781 = vmatpush1.msra.mxu0 0.0
    %782 = vmatprep.subr.mxu0 0.0
    %783 = vmatpush1.msra.mxu0 0.0
    %784 = vmatprep.mubr.f32.mxu0 0.0
    %785 = vmatmul.mubr.f32.gmra.mrb[0].mxu0 %v718
    %v786 = vpop.f32.mrb[0].mxu0
    %v787 = vadd.f32 0.0, %v786
    %v788 = vpop.f32.mrb[0].mxu0
    %789 = vdwg.mxu0
    %s790 = scalar_lea.vmem [#allocation7], 768
    %v791 = vld [vmem:[%s790] sm:$0xff]
    %v792 = vld [vmem:[%s790 + $0x8] sm:$0xff]
    %v793 = vld [vmem:[%s790 + $0x10] sm:$0xff]
    %v794 = vld [vmem:[%s790 + $0x18] sm:$0xff]
    %v795 = vld [vmem:[%s790 + $0x20] sm:$0xff]
    %v796 = vld [vmem:[%s790 + $0x28] sm:$0xff]
    %v797 = vld [vmem:[%s790 + $0x30] sm:$0xff]
    %v798 = vld [vmem:[%s790 + $0x38] sm:$0xff]
    %v799 = vld [vmem:[%s790 + $0x40] sm:$0xff]
    %v800 = vld [vmem:[%s790 + $0x48] sm:$0xff]
    %v801 = vld [vmem:[%s790 + $0x50] sm:$0xff]
    %v802 = vld [vmem:[%s790 + $0x58] sm:$0xff]
    %v803 = vld [vmem:[%s790 + $0x60] sm:$0xff]
    %v804 = vld [vmem:[%s790 + $0x68] sm:$0xff]
    %v805 = vld [vmem:[%s790 + $0x70] sm:$0xff]
    %v806 = vld [vmem:[%s790 + $0x78] sm:$0xff]
    %v807 = vld [vmem:[%s790 + $0x80] sm:$0xff]
    %v808 = vld [vmem:[%s790 + $0x88] sm:$0xff]
    %v809 = vld [vmem:[%s790 + $0x90] sm:$0xff]
    %v810 = vld [vmem:[%s790 + $0x98] sm:$0xff]
    %v811 = vld [vmem:[%s790 + $0xa0] sm:$0xff]
    %v812 = vld [vmem:[%s790 + $0xa8] sm:$0xff]
    %v813 = vld [vmem:[%s790 + $0xb0] sm:$0xff]
    %v814 = vld [vmem:[%s790 + $0xb8] sm:$0xff]
    %v815 = vld [vmem:[%s790 + $0xc0] sm:$0xff]
    %v816 = vld [vmem:[%s790 + $0xc8] sm:$0xff]
    %v817 = vld [vmem:[%s790 + $0xd0] sm:$0xff]
    %v818 = vld [vmem:[%s790 + $0xd8] sm:$0xff]
    %v819 = vld [vmem:[%s790 + $0xe0] sm:$0xff]
    %v820 = vld [vmem:[%s790 + $0xe8] sm:$0xff]
    %v821 = vld [vmem:[%s790 + $0xf0] sm:$0xff]
    %v822 = vld [vmem:[%s790 + $0xf8] sm:$0xff]
    %823 = vmatprep.subr.mxu0 %v792
    %824 = vmatpush1.msra.mxu0 %v791
    %825 = vmatprep.subr.mxu0 %v794
    %826 = vmatpush1.msra.mxu0 %v793
    %827 = vmatprep.subr.mxu0 %v796
    %828 = vmatpush1.msra.mxu0 %v795
    %829 = vmatprep.subr.mxu0 %v798
    %830 = vmatpush1.msra.mxu0 %v797
    %831 = vmatprep.subr.mxu0 %v800
    %832 = vmatpush1.msra.mxu0 %v799
    %833 = vmatprep.subr.mxu0 %v802
    %834 = vmatpush1.msra.mxu0 %v801
    %835 = vmatprep.subr.mxu0 %v804
    %836 = vmatpush1.msra.mxu0 %v803
    %837 = vmatprep.subr.mxu0 %v806
    %838 = vmatpush1.msra.mxu0 %v805
    %839 = vmatprep.subr.mxu0 %v808
    %840 = vmatpush1.msra.mxu0 %v807
    %841 = vmatprep.subr.mxu0 %v810
    %842 = vmatpush1.msra.mxu0 %v809
    %843 = vmatprep.subr.mxu0 %v812
    %844 = vmatpush1.msra.mxu0 %v811
    %845 = vmatprep.subr.mxu0 %v814
    %846 = vmatpush1.msra.mxu0 %v813
    %847 = vmatprep.subr.mxu0 %v816
    %848 = vmatpush1.msra.mxu0 %v815
    %849 = vmatprep.subr.mxu0 %v818
    %850 = vmatpush1.msra.mxu0 %v817
    %851 = vmatprep.subr.mxu0 %v820
    %852 = vmatpush1.msra.mxu0 %v819
    %853 = vmatprep.subr.mxu0 %v822
    %854 = vmatpush1.msra.mxu0 %v821
    %855 = vmatprep.subr.mxu0 0.0
    %856 = vmatpush1.msra.mxu0 0.0
    %857 = vmatprep.subr.mxu0 0.0
    %858 = vmatpush1.msra.mxu0 0.0
    %859 = vmatprep.subr.mxu0 0.0
    %860 = vmatpush1.msra.mxu0 0.0
    %861 = vmatprep.subr.mxu0 0.0
    %862 = vmatpush1.msra.mxu0 0.0
    %863 = vmatprep.subr.mxu0 0.0
    %864 = vmatpush1.msra.mxu0 0.0
    %865 = vmatprep.subr.mxu0 0.0
    %866 = vmatpush1.msra.mxu0 0.0
    %867 = vmatprep.subr.mxu0 0.0
    %868 = vmatpush1.msra.mxu0 0.0
    %869 = vmatprep.subr.mxu0 0.0
    %870 = vmatpush1.msra.mxu0 0.0
    %871 = vmatprep.subr.mxu0 0.0
    %872 = vmatpush1.msra.mxu0 0.0
    %873 = vmatprep.subr.mxu0 0.0
    %874 = vmatpush1.msra.mxu0 0.0
    %875 = vmatprep.subr.mxu0 0.0
    %876 = vmatpush1.msra.mxu0 0.0
    %877 = vmatprep.subr.mxu0 0.0
    %878 = vmatpush1.msra.mxu0 0.0
    %879 = vmatprep.subr.mxu0 0.0
    %880 = vmatpush1.msra.mxu0 0.0
    %881 = vmatprep.subr.mxu0 0.0
    %882 = vmatpush1.msra.mxu0 0.0
    %883 = vmatprep.subr.mxu0 0.0
    %884 = vmatpush1.msra.mxu0 0.0
    %885 = vmatprep.subr.mxu0 0.0
    %886 = vmatpush1.msra.mxu0 0.0
    %887 = vmatprep.mubr.f32.mxu0 0.0
    %888 = vmatmul.mubr.f32.gmra.mrb[0].mxu0 %v787
    %v889 = vpop.f32.mrb[0].mxu0
    %v890 = vadd.f32 0.0, %v889
    %v891 = vpop.f32.mrb[0].mxu0
    %v892 = vadd.f32 0.0, %v891
    %893 = vdwg.mxu0
    %v894 = vadd.f32 %v713, %v890
    %v895 = vadd.f32 %v714, %v892
    %s896 = scalar_lea.vmem [#allocation5], 32
    %v897 = vld [vmem:[%s896] sm:$0xff]
    %v899 = vsel %vm178, %v897, 0
    %901 = vmatprep.subr.mxu0 0.0
    %902 = vmatpush1.msra.mxu0 %v111
    %903 = vmatprep.subr.mxu0 0.0
    %904 = vmatpush1.msra.mxu0 %v112
    %905 = vmatprep.subr.mxu0 0.0
    %906 = vmatpush1.msra.mxu0 0.0
    %907 = vmatprep.subr.mxu0 0.0
    %908 = vmatpush1.msra.mxu0 0.0
    %909 = vmatprep.subr.mxu0 0.0
    %910 = vmatpush1.msra.mxu0 0.0
    %911 = vmatprep.subr.mxu0 0.0
    %912 = vmatpush1.msra.mxu0 0.0
    %913 = vmatprep.subr.mxu0 0.0
    %914 = vmatpush1.msra.mxu0 0.0
    %915 = vmatprep.subr.mxu0 0.0
    %916 = vmatpush1.msra.mxu0 0.0
    %917 = vmatprep.subr.mxu0 0.0
    %918 = vmatpush1.msra.mxu0 0.0
    %919 = vmatprep.subr.mxu0 0.0
    %920 = vmatpush1.msra.mxu0 0.0
    %921 = vmatprep.subr.mxu0 0.0
    %922 = vmatpush1.msra.mxu0 0.0
    %923 = vmatprep.subr.mxu0 0.0
    %924 = vmatpush1.msra.mxu0 0.0
    %925 = vmatprep.subr.mxu0 0.0
    %926 = vmatpush1.msra.mxu0 0.0
    %927 = vmatprep.subr.mxu0 0.0
    %928 = vmatpush1.msra.mxu0 0.0
    %929 = vmatprep.subr.mxu0 0.0
    %930 = vmatpush1.msra.mxu0 0.0
    %931 = vmatprep.subr.mxu0 0.0
    %932 = vmatpush1.msra.mxu0 0.0
    %933 = vmatprep.subr.mxu0 0.0
    %934 = vmatpush1.msra.mxu0 0.0
    %935 = vmatprep.subr.mxu0 0.0
    %936 = vmatpush1.msra.mxu0 0.0
    %937 = vmatprep.subr.mxu0 0.0
    %938 = vmatpush1.msra.mxu0 0.0
    %939 = vmatprep.subr.mxu0 0.0
    %940 = vmatpush1.msra.mxu0 0.0
    %941 = vmatprep.subr.mxu0 0.0
    %942 = vmatpush1.msra.mxu0 0.0
    %943 = vmatprep.subr.mxu0 0.0
    %944 = vmatpush1.msra.mxu0 0.0
    %945 = vmatprep.subr.mxu0 0.0
    %946 = vmatpush1.msra.mxu0 0.0
    %947 = vmatprep.subr.mxu0 0.0
    %948 = vmatpush1.msra.mxu0 0.0
    %949 = vmatprep.subr.mxu0 0.0
    %950 = vmatpush1.msra.mxu0 0.0
    %951 = vmatprep.subr.mxu0 0.0
    %952 = vmatpush1.msra.mxu0 0.0
    %953 = vmatprep.subr.mxu0 0.0
    %954 = vmatpush1.msra.mxu0 0.0
    %955 = vmatprep.subr.mxu0 0.0
    %956 = vmatpush1.msra.mxu0 0.0
    %957 = vmatprep.subr.mxu0 0.0
    %958 = vmatpush1.msra.mxu0 0.0
    %959 = vmatprep.subr.mxu0 0.0
    %960 = vmatpush1.msra.mxu0 0.0
    %961 = vmatprep.subr.mxu0 0.0
    %962 = vmatpush1.msra.mxu0 0.0
    %963 = vmatprep.subr.mxu0 0.0
    %964 = vmatpush1.msra.mxu0 0.0
    %965 = vmatprep.mubr.f32.mxu0 0.0
    %966 = vmatmul.mubr.f32.gmra.mrb[0].mxu0 %v899
    %v967 = vpop.f32.mrb[0].mxu0
    %v968 = vadd.f32 0.0, %v967
    %v969 = vpop.f32.mrb[0].mxu0
    %970 = vdwg.mxu0
    %s971 = scalar_lea.vmem [#allocation7], 1024
    %v972 = vld [vmem:[%s971] sm:$0xff]
    %v973 = vld [vmem:[%s971 + $0x8] sm:$0xff]
    %v974 = vld [vmem:[%s971 + $0x10] sm:$0xff]
    %v975 = vld [vmem:[%s971 + $0x18] sm:$0xff]
    %v976 = vld [vmem:[%s971 + $0x20] sm:$0xff]
    %v977 = vld [vmem:[%s971 + $0x28] sm:$0xff]
    %v978 = vld [vmem:[%s971 + $0x30] sm:$0xff]
    %v979 = vld [vmem:[%s971 + $0x38] sm:$0xff]
    %v980 = vld [vmem:[%s971 + $0x40] sm:$0xff]
    %v981 = vld [vmem:[%s971 + $0x48] sm:$0xff]
    %v982 = vld [vmem:[%s971 + $0x50] sm:$0xff]
    %v983 = vld [vmem:[%s971 + $0x58] sm:$0xff]
    %v984 = vld [vmem:[%s971 + $0x60] sm:$0xff]
    %v985 = vld [vmem:[%s971 + $0x68] sm:$0xff]
    %v986 = vld [vmem:[%s971 + $0x70] sm:$0xff]
    %v987 = vld [vmem:[%s971 + $0x78] sm:$0xff]
    %v988 = vld [vmem:[%s971 + $0x80] sm:$0xff]
    %v989 = vld [vmem:[%s971 + $0x88] sm:$0xff]
    %v990 = vld [vmem:[%s971 + $0x90] sm:$0xff]
    %v991 = vld [vmem:[%s971 + $0x98] sm:$0xff]
    %v992 = vld [vmem:[%s971 + $0xa0] sm:$0xff]
    %v993 = vld [vmem:[%s971 + $0xa8] sm:$0xff]
    %v994 = vld [vmem:[%s971 + $0xb0] sm:$0xff]
    %v995 = vld [vmem:[%s971 + $0xb8] sm:$0xff]
    %v996 = vld [vmem:[%s971 + $0xc0] sm:$0xff]
    %v997 = vld [vmem:[%s971 + $0xc8] sm:$0xff]
    %v998 = vld [vmem:[%s971 + $0xd0] sm:$0xff]
    %v999 = vld [vmem:[%s971 + $0xd8] sm:$0xff]
    %v1000 = vld [vmem:[%s971 + $0xe0] sm:$0xff]
    %v1001 = vld [vmem:[%s971 + $0xe8] sm:$0xff]
    %v1002 = vld [vmem:[%s971 + $0xf0] sm:$0xff]
    %v1003 = vld [vmem:[%s971 + $0xf8] sm:$0xff]
    %1004 = vmatprep.subr.mxu0 %v973
    %1005 = vmatpush1.msra.mxu0 %v972
    %1006 = vmatprep.subr.mxu0 %v975
    %1007 = vmatpush1.msra.mxu0 %v974
    %1008 = vmatprep.subr.mxu0 %v977
    %1009 = vmatpush1.msra.mxu0 %v976
    %1010 = vmatprep.subr.mxu0 %v979
    %1011 = vmatpush1.msra.mxu0 %v978
    %1012 = vmatprep.subr.mxu0 %v981
    %1013 = vmatpush1.msra.mxu0 %v980
    %1014 = vmatprep.subr.mxu0 %v983
    %1015 = vmatpush1.msra.mxu0 %v982
    %1016 = vmatprep.subr.mxu0 %v985
    %1017 = vmatpush1.msra.mxu0 %v984
    %1018 = vmatprep.subr.mxu0 %v987
    %1019 = vmatpush1.msra.mxu0 %v986
    %1020 = vmatprep.subr.mxu0 %v989
    %1021 = vmatpush1.msra.mxu0 %v988
    %1022 = vmatprep.subr.mxu0 %v991
    %1023 = vmatpush1.msra.mxu0 %v990
    %1024 = vmatprep.subr.mxu0 %v993
    %1025 = vmatpush1.msra.mxu0 %v992
    %1026 = vmatprep.subr.mxu0 %v995
    %1027 = vmatpush1.msra.mxu0 %v994
    %1028 = vmatprep.subr.mxu0 %v997
    %1029 = vmatpush1.msra.mxu0 %v996
    %1030 = vmatprep.subr.mxu0 %v999
    %1031 = vmatpush1.msra.mxu0 %v998
    %1032 = vmatprep.subr.mxu0 %v1001
    %1033 = vmatpush1.msra.mxu0 %v1000
    %1034 = vmatprep.subr.mxu0 %v1003
    %1035 = vmatpush1.msra.mxu0 %v1002
    %1036 = vmatprep.subr.mxu0 0.0
    %1037 = vmatpush1.msra.mxu0 0.0
    %1038 = vmatprep.subr.mxu0 0.0
    %1039 = vmatpush1.msra.mxu0 0.0
    %1040 = vmatprep.subr.mxu0 0.0
    %1041 = vmatpush1.msra.mxu0 0.0
    %1042 = vmatprep.subr.mxu0 0.0
    %1043 = vmatpush1.msra.mxu0 0.0
    %1044 = vmatprep.subr.mxu0 0.0
    %1045 = vmatpush1.msra.mxu0 0.0
    %1046 = vmatprep.subr.mxu0 0.0
    %1047 = vmatpush1.msra.mxu0 0.0
    %1048 = vmatprep.subr.mxu0 0.0
    %1049 = vmatpush1.msra.mxu0 0.0
    %1050 = vmatprep.subr.mxu0 0.0
    %1051 = vmatpush1.msra.mxu0 0.0
    %1052 = vmatprep.subr.mxu0 0.0
    %1053 = vmatpush1.msra.mxu0 0.0
    %1054 = vmatprep.subr.mxu0 0.0
    %1055 = vmatpush1.msra.mxu0 0.0
    %1056 = vmatprep.subr.mxu0 0.0
    %1057 = vmatpush1.msra.mxu0 0.0
    %1058 = vmatprep.subr.mxu0 0.0
    %1059 = vmatpush1.msra.mxu0 0.0
    %1060 = vmatprep.subr.mxu0 0.0
    %1061 = vmatpush1.msra.mxu0 0.0
    %1062 = vmatprep.subr.mxu0 0.0
    %1063 = vmatpush1.msra.mxu0 0.0
    %1064 = vmatprep.subr.mxu0 0.0
    %1065 = vmatpush1.msra.mxu0 0.0
    %1066 = vmatprep.subr.mxu0 0.0
    %1067 = vmatpush1.msra.mxu0 0.0
    %1068 = vmatprep.mubr.f32.mxu0 0.0
    %1069 = vmatmul.mubr.f32.gmra.mrb[0].mxu0 %v968
    %v1070 = vpop.f32.mrb[0].mxu0
    %v1071 = vadd.f32 0.0, %v1070
    %v1072 = vpop.f32.mrb[0].mxu0
    %v1073 = vadd.f32 0.0, %v1072
    %1074 = vdwg.mxu0
    %v1075 = vadd.f32 %v894, %v1071
    %v1076 = vadd.f32 %v895, %v1073
    %v1077 = vlaneseq
    %v1078 = vshrl.u32 %v1077, 7
    %v1079 = vsub.s32 0, %v1078
    %v1080 = vrot.slane %v109, %v1079
    %v1081 = vlaneseq
    %v1082 = vshrl.u32 %v1081, 7
    %v1083 = vsub.s32 0, %v1082
    %v1084 = vrot.slane %v110, %v1083
    %v1085 = vadd.f32 %v1075, %v1080
    %v1086 = vadd.f32 %v1076, %v1084
    %v1087 = vrot.slane %v1085, 4
    %v1088 = vadd.f32 %v1085, %v1087
    %v1089 = vrot.slane %v1088, 2
    %v1090 = vadd.f32 %v1088, %v1089
    %v1091 = vrot.slane %v1090, 1
    %v1092 = vadd.f32 %v1090, %v1091
    %v1093 = vrot.slane %v1086, 4
    %v1094 = vadd.f32 %v1086, %v1093
    %v1095 = vrot.slane %v1094, 2
    %v1096 = vadd.f32 %v1094, %v1095
    %v1097 = vrot.slane %v1096, 1
    %v1098 = vadd.f32 %v1096, %v1097
    %1099 = vmatprep.subr.mxu0 %v114
    %1100 = vmatpush1.msra.mxu0 %v113
    %1101 = vmatprep.subr.mxu0 %v116
    %1102 = vmatpush1.msra.mxu0 %v115
    %1103 = vmatprep.subr.mxu0 %v118
    %1104 = vmatpush1.msra.mxu0 %v117
    %1105 = vmatprep.subr.mxu0 %v120
    %1106 = vmatpush1.msra.mxu0 %v119
    %1107 = vmatprep.subr.mxu0 %v122
    %1108 = vmatpush1.msra.mxu0 %v121
    %1109 = vmatprep.subr.mxu0 %v124
    %1110 = vmatpush1.msra.mxu0 %v123
    %1111 = vmatprep.subr.mxu0 %v126
    %1112 = vmatpush1.msra.mxu0 %v125
    %1113 = vmatprep.subr.mxu0 %v128
    %1114 = vmatpush1.msra.mxu0 %v127
    %1115 = vmatprep.subr.mxu0 %v130
    %1116 = vmatpush1.msra.mxu0 %v129
    %1117 = vmatprep.subr.mxu0 %v132
    %1118 = vmatpush1.msra.mxu0 %v131
    %1119 = vmatprep.subr.mxu0 %v134
    %1120 = vmatpush1.msra.mxu0 %v133
    %1121 = vmatprep.subr.mxu0 %v136
    %1122 = vmatpush1.msra.mxu0 %v135
    %1123 = vmatprep.subr.mxu0 %v138
    %1124 = vmatpush1.msra.mxu0 %v137
    %1125 = vmatprep.subr.mxu0 %v140
    %1126 = vmatpush1.msra.mxu0 %v139
    %1127 = vmatprep.subr.mxu0 %v142
    %1128 = vmatpush1.msra.mxu0 %v141
    %1129 = vmatprep.subr.mxu0 %v144
    %1130 = vmatpush1.msra.mxu0 %v143
    %1131 = vmatprep.subr.mxu0 %v146
    %1132 = vmatpush1.msra.mxu0 %v145
    %1133 = vmatprep.subr.mxu0 %v148
    %1134 = vmatpush1.msra.mxu0 %v147
    %1135 = vmatprep.subr.mxu0 %v150
    %1136 = vmatpush1.msra.mxu0 %v149
    %1137 = vmatprep.subr.mxu0 %v152
    %1138 = vmatpush1.msra.mxu0 %v151
    %1139 = vmatprep.subr.mxu0 %v154
    %1140 = vmatpush1.msra.mxu0 %v153
    %1141 = vmatprep.subr.mxu0 %v156
    %1142 = vmatpush1.msra.mxu0 %v155
    %1143 = vmatprep.subr.mxu0 %v158
    %1144 = vmatpush1.msra.mxu0 %v157
    %1145 = vmatprep.subr.mxu0 %v160
    %1146 = vmatpush1.msra.mxu0 %v159
    %1147 = vmatprep.subr.mxu0 %v162
    %1148 = vmatpush1.msra.mxu0 %v161
    %1149 = vmatprep.subr.mxu0 %v164
    %1150 = vmatpush1.msra.mxu0 %v163
    %1151 = vmatprep.subr.mxu0 %v166
    %1152 = vmatpush1.msra.mxu0 %v165
    %1153 = vmatprep.subr.mxu0 %v168
    %1154 = vmatpush1.msra.mxu0 %v167
    %1155 = vmatprep.subr.mxu0 %v170
    %1156 = vmatpush1.msra.mxu0 %v169
    %1157 = vmatprep.subr.mxu0 %v172
    %1158 = vmatpush1.msra.mxu0 %v171
    %1159 = vmatprep.subr.mxu0 %v174
    %1160 = vmatpush1.msra.mxu0 %v173
    %1161 = vmatprep.subr.mxu0 %v176
    %1162 = vmatpush1.msra.mxu0 %v175
    %1163 = vmatprep.mubr.f32.mxu0 %v1098
    %1164 = vmatmul.mubr.f32.gmra.mrb[0].mxu0 %v1092
    %v1165 = vpop.f32.mrb[0].mxu0
    %v1166 = vadd.f32 0.0, %v1165
    %v1167 = vpop.f32.mrb[0].mxu0
    %v1168 = vadd.f32 0.0, %v1167
    %1169 = vdwg.mxu0
    %v1170 = vmul.f32 %v1166, 0.0625
    %v1171 = vmul.f32 %v1168, 0.0625
    %v1172 = vlaneseq
    %v1173 = vshrl.u32 %v1172, 7
    %v1174 = vsub.s32 0, %v1173
    %v1175 = vrot.slane %v1170, %v1174
    %v1176 = vlaneseq
    %v1177 = vshrl.u32 %v1176, 7
    %v1178 = vsub.s32 0, %v1177
    %v1179 = vrot.slane %v1171, %v1178
    %v1180 = vsub.f32 %v1085, %v1175
    %v1181 = vsub.f32 %v1086, %v1179
    %v1182 = vmul.f32 %v1180, %v1180
    %v1183 = vmul.f32 %v1181, %v1181
    %v1184 = vrot.slane %v1182, 4
    %v1185 = vadd.f32 %v1182, %v1184
    %v1186 = vrot.slane %v1185, 2
    %v1187 = vadd.f32 %v1185, %v1186
    %v1188 = vrot.slane %v1187, 1
    %v1189 = vadd.f32 %v1187, %v1188
    %v1190 = vrot.slane %v1183, 4
    %v1191 = vadd.f32 %v1183, %v1190
    %v1192 = vrot.slane %v1191, 2
    %v1193 = vadd.f32 %v1191, %v1192
    %v1194 = vrot.slane %v1193, 1
    %v1195 = vadd.f32 %v1193, %v1194
    %1196 = vmatprep.subr.mxu0 %v114
    %1197 = vmatpush1.msra.mxu0 %v113
    %1198 = vmatprep.subr.mxu0 %v116
    %1199 = vmatpush1.msra.mxu0 %v115
    %1200 = vmatprep.subr.mxu0 %v118
    %1201 = vmatpush1.msra.mxu0 %v117
    %1202 = vmatprep.subr.mxu0 %v120
    %1203 = vmatpush1.msra.mxu0 %v119
    %1204 = vmatprep.subr.mxu0 %v122
    %1205 = vmatpush1.msra.mxu0 %v121
    %1206 = vmatprep.subr.mxu0 %v124
    %1207 = vmatpush1.msra.mxu0 %v123
    %1208 = vmatprep.subr.mxu0 %v126
    %1209 = vmatpush1.msra.mxu0 %v125
    %1210 = vmatprep.subr.mxu0 %v128
    %1211 = vmatpush1.msra.mxu0 %v127
    %1212 = vmatprep.subr.mxu0 %v130
    %1213 = vmatpush1.msra.mxu0 %v129
    %1214 = vmatprep.subr.mxu0 %v132
    %1215 = vmatpush1.msra.mxu0 %v131
    %1216 = vmatprep.subr.mxu0 %v134
    %1217 = vmatpush1.msra.mxu0 %v133
    %1218 = vmatprep.subr.mxu0 %v136
    %1219 = vmatpush1.msra.mxu0 %v135
    %1220 = vmatprep.subr.mxu0 %v138
    %1221 = vmatpush1.msra.mxu0 %v137
    %1222 = vmatprep.subr.mxu0 %v140
    %1223 = vmatpush1.msra.mxu0 %v139
    %1224 = vmatprep.subr.mxu0 %v142
    %1225 = vmatpush1.msra.mxu0 %v141
    %1226 = vmatprep.subr.mxu0 %v144
    %1227 = vmatpush1.msra.mxu0 %v143
    %1228 = vmatprep.subr.mxu0 %v146
    %1229 = vmatpush1.msra.mxu0 %v145
    %1230 = vmatprep.subr.mxu0 %v148
    %1231 = vmatpush1.msra.mxu0 %v147
    %1232 = vmatprep.subr.mxu0 %v150
    %1233 = vmatpush1.msra.mxu0 %v149
    %1234 = vmatprep.subr.mxu0 %v152
    %1235 = vmatpush1.msra.mxu0 %v151
    %1236 = vmatprep.subr.mxu0 %v154
    %1237 = vmatpush1.msra.mxu0 %v153
    %1238 = vmatprep.subr.mxu0 %v156
    %1239 = vmatpush1.msra.mxu0 %v155
    %1240 = vmatprep.subr.mxu0 %v158
    %1241 = vmatpush1.msra.mxu0 %v157
    %1242 = vmatprep.subr.mxu0 %v160
    %1243 = vmatpush1.msra.mxu0 %v159
    %1244 = vmatprep.subr.mxu0 %v162
    %1245 = vmatpush1.msra.mxu0 %v161
    %1246 = vmatprep.subr.mxu0 %v164
    %1247 = vmatpush1.msra.mxu0 %v163
    %1248 = vmatprep.subr.mxu0 %v166
    %1249 = vmatpush1.msra.mxu0 %v165
    %1250 = vmatprep.subr.mxu0 %v168
    %1251 = vmatpush1.msra.mxu0 %v167
    %1252 = vmatprep.subr.mxu0 %v170
    %1253 = vmatpush1.msra.mxu0 %v169
    %1254 = vmatprep.subr.mxu0 %v172
    %1255 = vmatpush1.msra.mxu0 %v171
    %1256 = vmatprep.subr.mxu0 %v174
    %1257 = vmatpush1.msra.mxu0 %v173
    %1258 = vmatprep.subr.mxu0 %v176
    %1259 = vmatpush1.msra.mxu0 %v175
    %1260 = vmatprep.mubr.f32.mxu0 %v1195
    %1261 = vmatmul.mubr.f32.gmra.mrb[0].mxu0 %v1189
    %v1262 = vpop.f32.mrb[0].mxu0
    %v1263 = vadd.f32 0.0, %v1262
    %v1264 = vpop.f32.mrb[0].mxu0
    %v1265 = vadd.f32 0.0, %v1264
    %1266 = vdwg.mxu0
    %v1267 = vmul.f32 %v1263, 0.0625
    %v1268 = vmul.f32 %v1265, 0.0625
    %v1269 = vadd.f32 %v1267, 1e-05
    %v1270 = vadd.f32 %v1268, 1e-05
    %v1271 = vrsqrt.pop %v1269
    %v1272 = vrsqrt.pop %v1270
    %v1273 = vlaneseq
    %v1274 = vshrl.u32 %v1273, 7
    %v1275 = vsub.s32 0, %v1274
    %v1276 = vrot.slane %v1271, %v1275
    %v1277 = vlaneseq
    %v1278 = vshrl.u32 %v1277, 7
    %v1279 = vsub.s32 0, %v1278
    %v1280 = vrot.slane %v1272, %v1279
    %v1281 = vmul.f32 %v1180, %v1276
    %v1282 = vmul.f32 %v1181, %v1280
    %v1283 = vlaneseq
    %v1284 = vshrl.u32 %v1283, 7
    %v1285 = vsub.s32 1, %v1284
    %v1286 = vrot.slane %v109, %v1285
    %v1287 = vlaneseq
    %v1288 = vshrl.u32 %v1287, 7
    %v1289 = vsub.s32 1, %v1288
    %v1290 = vrot.slane %v110, %v1289
    %v1291 = vmul.f32 %v1281, %v1286
    %v1292 = vmul.f32 %v1282, %v1290
    %v1293 = vlaneseq
    %v1294 = vshrl.u32 %v1293, 7
    %v1295 = vsub.s32 2, %v1294
    %v1296 = vrot.slane %v109, %v1295
    %v1297 = vlaneseq
    %v1298 = vshrl.u32 %v1297, 7
    %v1299 = vsub.s32 2, %v1298
    %v1300 = vrot.slane %v110, %v1299
    %v1301 = vadd.f32 %v1291, %v1296
    %v1302 = vadd.f32 %v1292, %v1300
    %v1303 = vmin.f32 %v1301, 20.0
    %v1304 = vmin.f32 %v1302, 20.0
    %v1305 = vmul.f32 %v1303, 1.442695
    %v1306 = vpow.pop %v1305
    %v1307 = vmul.f32 %v1304, 1.442695
    %v1308 = vpow.pop %v1307
    %v1309 = vadd.f32 %v1306, 2.0
    %v1310 = vadd.f32 %v1308, 2.0
    %v1311 = vmul.f32 %v1306, %v1309
    %v1312 = vmul.f32 %v1308, %v1310
    %vm1313 = vcmp.gt.f32.partialorder %v1301, 20.0
    %vm1314 = vcmp.gt.f32.partialorder %v1302, 20.0
    %v1315 = vadd.f32 %v1311, 2.0
    %v1316 = vadd.f32 %v1312, 2.0
    %v1317 = vrcp.pop %v1315
    %v1318 = vmul.f32 %v1311, %v1317
    %v1319 = vrcp.pop %v1316
    %v1320 = vmul.f32 %v1312, %v1319
    %v1321 = vsel %vm1313, 1.0, %v1318
    %v1322 = vsel %vm1314, 1.0, %v1320
    %v1323 = vmul.f32 %v1301, %v1321
    %v1324 = vmul.f32 %v1302, %v1322
    %v1325 = vld [vmem:[#allocation8] sm:$0xf]
    %vm1326 = vcmask 64512
    %v1328 = vsel %vm1326, %v1325, 0
    %1330 = vmatprep.subr.mxu0 %v1324
    %1331 = vmatpush1.msra.mxu0 %v1323
    %1332 = vmatprep.subr.mxu0 0.0
    %1333 = vmatpush1.msra.mxu0 0.0
    %1334 = vmatprep.subr.mxu0 0.0
    %1335 = vmatpush1.msra.mxu0 0.0
    %1336 = vmatprep.subr.mxu0 0.0
    %1337 = vmatpush1.msra.mxu0 0.0
    %1338 = vmatprep.subr.mxu0 0.0
    %1339 = vmatpush1.msra.mxu0 0.0
    %1340 = vmatprep.subr.mxu0 0.0
    %1341 = vmatpush1.msra.mxu0 0.0
    %1342 = vmatprep.subr.mxu0 0.0
    %1343 = vmatpush1.msra.mxu0 0.0
    %1344 = vmatprep.subr.mxu0 0.0
    %1345 = vmatpush1.msra.mxu0 0.0
    %1346 = vmatprep.subr.mxu0 0.0
    %1347 = vmatpush1.msra.mxu0 0.0
    %1348 = vmatprep.subr.mxu0 0.0
    %1349 = vmatpush1.msra.mxu0 0.0
    %1350 = vmatprep.subr.mxu0 0.0
    %1351 = vmatpush1.msra.mxu0 0.0
    %1352 = vmatprep.subr.mxu0 0.0
    %1353 = vmatpush1.msra.mxu0 0.0
    %1354 = vmatprep.subr.mxu0 0.0
    %1355 = vmatpush1.msra.mxu0 0.0
    %1356 = vmatprep.subr.mxu0 0.0
    %1357 = vmatpush1.msra.mxu0 0.0
    %1358 = vmatprep.subr.mxu0 0.0
    %1359 = vmatpush1.msra.mxu0 0.0
    %1360 = vmatprep.subr.mxu0 0.0
    %1361 = vmatpush1.msra.mxu0 0.0
    %1362 = vmatprep.subr.mxu0 0.0
    %1363 = vmatpush1.msra.mxu0 0.0
    %1364 = vmatprep.subr.mxu0 0.0
    %1365 = vmatpush1.msra.mxu0 0.0
    %1366 = vmatprep.subr.mxu0 0.0
    %1367 = vmatpush1.msra.mxu0 0.0
    %1368 = vmatprep.subr.mxu0 0.0
    %1369 = vmatpush1.msra.mxu0 0.0
    %1370 = vmatprep.subr.mxu0 0.0
    %1371 = vmatpush1.msra.mxu0 0.0
    %1372 = vmatprep.subr.mxu0 0.0
    %1373 = vmatpush1.msra.mxu0 0.0
    %1374 = vmatprep.subr.mxu0 0.0
    %1375 = vmatpush1.msra.mxu0 0.0
    %1376 = vmatprep.subr.mxu0 0.0
    %1377 = vmatpush1.msra.mxu0 0.0
    %1378 = vmatprep.subr.mxu0 0.0
    %1379 = vmatpush1.msra.mxu0 0.0
    %1380 = vmatprep.subr.mxu0 0.0
    %1381 = vmatpush1.msra.mxu0 0.0
    %1382 = vmatprep.subr.mxu0 0.0
    %1383 = vmatpush1.msra.mxu0 0.0
    %1384 = vmatprep.subr.mxu0 0.0
    %1385 = vmatpush1.msra.mxu0 0.0
    %1386 = vmatprep.subr.mxu0 0.0
    %1387 = vmatpush1.msra.mxu0 0.0
    %1388 = vmatprep.subr.mxu0 0.0
    %1389 = vmatpush1.msra.mxu0 0.0
    %1390 = vmatprep.subr.mxu0 0.0
    %1391 = vmatpush1.msra.mxu0 0.0
    %1392 = vmatprep.subr.mxu0 0.0
    %1393 = vmatpush1.msra.mxu0 0.0
    %1394 = vmatprep.mubr.f32.mxu0 0.0
    %1395 = vmatmul.mubr.f32.gmra.mrb[0].mxu0 %v1328
    %v1396 = vpop.f32.mrb[0].mxu0
    %v1397 = vadd.f32 0.0, %v1396
    %v1398 = vpop.f32.mrb[0].mxu0
    %v1399 = vadd.f32 0.0, %v1398
    %1400 = vdwg.mxu0
    %v1401 = vld [vmem:[#allocation10] sm:$0xff]
    %v1402 = vld [vmem:[#allocation10 + $0x8] sm:$0xff]
    %v1403 = vld [vmem:[#allocation10 + $0x10] sm:$0xff]
    %v1404 = vld [vmem:[#allocation10 + $0x18] sm:$0xff]
    %v1405 = vld [vmem:[#allocation10 + $0x20] sm:$0xff]
    %v1406 = vld [vmem:[#allocation10 + $0x28] sm:$0xff]
    %v1407 = vld [vmem:[#allocation10 + $0x30] sm:$0xff]
    %v1408 = vld [vmem:[#allocation10 + $0x38] sm:$0xff]
    %v1409 = vld [vmem:[#allocation10 + $0x40] sm:$0xff]
    %v1410 = vld [vmem:[#allocation10 + $0x48] sm:$0xff]
    %v1411 = vld [vmem:[#allocation10 + $0x50] sm:$0xff]
    %v1412 = vld [vmem:[#allocation10 + $0x58] sm:$0xff]
    %v1413 = vld [vmem:[#allocation10 + $0x60] sm:$0xff]
    %v1414 = vld [vmem:[#allocation10 + $0x68] sm:$0xff]
    %v1415 = vld [vmem:[#allocation10 + $0x70] sm:$0xff]
    %v1416 = vld [vmem:[#allocation10 + $0x78] sm:$0xff]
    %v1417 = vld [vmem:[#allocation10 + $0x80] sm:$0xff]
    %v1418 = vld [vmem:[#allocation10 + $0x88] sm:$0xff]
    %v1419 = vld [vmem:[#allocation10 + $0x90] sm:$0xff]
    %v1420 = vld [vmem:[#allocation10 + $0x98] sm:$0xff]
    %v1421 = vld [vmem:[#allocation10 + $0xa0] sm:$0xff]
    %v1422 = vld [vmem:[#allocation10 + $0xa8] sm:$0xff]
    %v1423 = vld [vmem:[#allocation10 + $0xb0] sm:$0xff]
    %v1424 = vld [vmem:[#allocation10 + $0xb8] sm:$0xff]
    %v1425 = vld [vmem:[#allocation10 + $0xc0] sm:$0xff]
    %v1426 = vld [vmem:[#allocation10 + $0xc8] sm:$0xff]
    %v1427 = vld [vmem:[#allocation10 + $0xd0] sm:$0xff]
    %v1428 = vld [vmem:[#allocation10 + $0xd8] sm:$0xff]
    %v1429 = vld [vmem:[#allocation10 + $0xe0] sm:$0xff]
    %v1430 = vld [vmem:[#allocation10 + $0xe8] sm:$0xff]
    %v1431 = vld [vmem:[#allocation10 + $0xf0] sm:$0xff]
    %v1432 = vld [vmem:[#allocation10 + $0xf8] sm:$0xff]
    %v1433 = vld [vmem:[#allocation10 + $0x100] sm:$0xff]
    %v1434 = vld [vmem:[#allocation10 + $0x108] sm:$0xff]
    %v1435 = vld [vmem:[#allocation10 + $0x110] sm:$0xff]
    %v1436 = vld [vmem:[#allocation10 + $0x118] sm:$0xff]
    %v1437 = vld [vmem:[#allocation10 + $0x120] sm:$0xff]
    %v1438 = vld [vmem:[#allocation10 + $0x128] sm:$0xff]
    %v1439 = vld [vmem:[#allocation10 + $0x130] sm:$0xff]
    %v1440 = vld [vmem:[#allocation10 + $0x138] sm:$0xff]
    %v1441 = vld [vmem:[#allocation10 + $0x140] sm:$0xff]
    %v1442 = vld [vmem:[#allocation10 + $0x148] sm:$0xff]
    %v1443 = vld [vmem:[#allocation10 + $0x150] sm:$0xff]
    %v1444 = vld [vmem:[#allocation10 + $0x158] sm:$0xff]
    %v1445 = vld [vmem:[#allocation10 + $0x160] sm:$0xff]
    %v1446 = vld [vmem:[#allocation10 + $0x168] sm:$0xff]
    %v1447 = vld [vmem:[#allocation10 + $0x170] sm:$0xff]
    %v1448 = vld [vmem:[#allocation10 + $0x178] sm:$0xff]
    %v1449 = vld [vmem:[#allocation10 + $0x180] sm:$0xff]
    %v1450 = vld [vmem:[#allocation10 + $0x188] sm:$0xff]
    %v1451 = vld [vmem:[#allocation10 + $0x190] sm:$0xff]
    %v1452 = vld [vmem:[#allocation10 + $0x198] sm:$0xff]
    %v1453 = vld [vmem:[#allocation10 + $0x1a0] sm:$0xff]
    %v1454 = vld [vmem:[#allocation10 + $0x1a8] sm:$0xff]
    %v1455 = vld [vmem:[#allocation10 + $0x1b0] sm:$0xff]
    %v1456 = vld [vmem:[#allocation10 + $0x1b8] sm:$0xff]
    %v1457 = vld [vmem:[#allocation10 + $0x1c0] sm:$0xff]
    %v1458 = vld [vmem:[#allocation10 + $0x1c8] sm:$0xff]
    %v1459 = vld [vmem:[#allocation10 + $0x1d0] sm:$0xff]
    %v1460 = vld [vmem:[#allocation10 + $0x1d8] sm:$0xff]
    %v1461 = vld [vmem:[#allocation10 + $0x1e0] sm:$0xff]
    %v1462 = vld [vmem:[#allocation10 + $0x1e8] sm:$0xff]
    %v1463 = vld [vmem:[#allocation10 + $0x1f0] sm:$0xff]
    %v1464 = vld [vmem:[#allocation10 + $0x1f8] sm:$0xff]
    %s1465 = scalar_lea.vmem [#allocation8], 4
    %v1466 = vld [vmem:[%s1465] sm:$0xf]
    %v1468 = vsel %vm1326, %v1466, 0
    %1470 = vmatprep.subr.mxu0 %v1324
    %1471 = vmatpush1.msra.mxu0 %v1323
    %1472 = vmatprep.subr.mxu0 0.0
    %1473 = vmatpush1.msra.mxu0 0.0
    %1474 = vmatprep.subr.mxu0 0.0
    %1475 = vmatpush1.msra.mxu0 0.0
    %1476 = vmatprep.subr.mxu0 0.0
    %1477 = vmatpush1.msra.mxu0 0.0
    %1478 = vmatprep.subr.mxu0 0.0
    %1479 = vmatpush1.msra.mxu0 0.0
    %1480 = vmatprep.subr.mxu0 0.0
    %1481 = vmatpush1.msra.mxu0 0.0
    %1482 = vmatprep.subr.mxu0 0.0
    %1483 = vmatpush1.msra.mxu0 0.0
    %1484 = vmatprep.subr.mxu0 0.0
    %1485 = vmatpush1.msra.mxu0 0.0
    %1486 = vmatprep.subr.mxu0 0.0
    %1487 = vmatpush1.msra.mxu0 0.0
    %1488 = vmatprep.subr.mxu0 0.0
    %1489 = vmatpush1.msra.mxu0 0.0
    %1490 = vmatprep.subr.mxu0 0.0
    %1491 = vmatpush1.msra.mxu0 0.0
    %1492 = vmatprep.subr.mxu0 0.0
    %1493 = vmatpush1.msra.mxu0 0.0
    %1494 = vmatprep.subr.mxu0 0.0
    %1495 = vmatpush1.msra.mxu0 0.0
    %1496 = vmatprep.subr.mxu0 0.0
    %1497 = vmatpush1.msra.mxu0 0.0
    %1498 = vmatprep.subr.mxu0 0.0
    %1499 = vmatpush1.msra.mxu0 0.0
    %1500 = vmatprep.subr.mxu0 0.0
    %1501 = vmatpush1.msra.mxu0 0.0
    %1502 = vmatprep.subr.mxu0 0.0
    %1503 = vmatpush1.msra.mxu0 0.0
    %1504 = vmatprep.subr.mxu0 0.0
    %1505 = vmatpush1.msra.mxu0 0.0
    %1506 = vmatprep.subr.mxu0 0.0
    %1507 = vmatpush1.msra.mxu0 0.0
    %1508 = vmatprep.subr.mxu0 0.0
    %1509 = vmatpush1.msra.mxu0 0.0
    %1510 = vmatprep.subr.mxu0 0.0
    %1511 = vmatpush1.msra.mxu0 0.0
    %1512 = vmatprep.subr.mxu0 0.0
    %1513 = vmatpush1.msra.mxu0 0.0
    %1514 = vmatprep.subr.mxu0 0.0
    %1515 = vmatpush1.msra.mxu0 0.0
    %1516 = vmatprep.subr.mxu0 0.0
    %1517 = vmatpush1.msra.mxu0 0.0
    %1518 = vmatprep.subr.mxu0 0.0
    %1519 = vmatpush1.msra.mxu0 0.0
    %1520 = vmatprep.subr.mxu0 0.0
    %1521 = vmatpush1.msra.mxu0 0.0
    %1522 = vmatprep.subr.mxu0 0.0
    %1523 = vmatpush1.msra.mxu0 0.0
    %1524 = vmatprep.subr.mxu0 0.0
    %1525 = vmatpush1.msra.mxu0 0.0
    %1526 = vmatprep.subr.mxu0 0.0
    %1527 = vmatpush1.msra.mxu0 0.0
    %1528 = vmatprep.subr.mxu0 0.0
    %1529 = vmatpush1.msra.mxu0 0.0
    %1530 = vmatprep.subr.mxu0 0.0
    %1531 = vmatpush1.msra.mxu0 0.0
    %1532 = vmatprep.subr.mxu0 0.0
    %1533 = vmatpush1.msra.mxu0 0.0
    %1534 = vmatprep.mubr.f32.mxu0 0.0
    %1535 = vmatmul.mubr.f32.gmra.mrb[0].mxu0 %v1468
    %v1536 = vpop.f32.mrb[0].mxu0
    %v1537 = vadd.f32 0.0, %v1536
    %v1538 = vpop.f32.mrb[0].mxu0
    %v1539 = vadd.f32 0.0, %v1538
    %1540 = vdwg.mxu0
    %s1541 = scalar_lea.vmem [#allocation10], 512
    %v1542 = vld [vmem:[%s1541] sm:$0xff]
    %v1543 = vld [vmem:[%s1541 + $0x8] sm:$0xff]
    %v1544 = vld [vmem:[%s1541 + $0x10] sm:$0xff]
    %v1545 = vld [vmem:[%s1541 + $0x18] sm:$0xff]
    %v1546 = vld [vmem:[%s1541 + $0x20] sm:$0xff]
    %v1547 = vld [vmem:[%s1541 + $0x28] sm:$0xff]
    %v1548 = vld [vmem:[%s1541 + $0x30] sm:$0xff]
    %v1549 = vld [vmem:[%s1541 + $0x38] sm:$0xff]
    %v1550 = vld [vmem:[%s1541 + $0x40] sm:$0xff]
    %v1551 = vld [vmem:[%s1541 + $0x48] sm:$0xff]
    %v1552 = vld [vmem:[%s1541 + $0x50] sm:$0xff]
    %v1553 = vld [vmem:[%s1541 + $0x58] sm:$0xff]
    %v1554 = vld [vmem:[%s1541 + $0x60] sm:$0xff]
    %v1555 = vld [vmem:[%s1541 + $0x68] sm:$0xff]
    %v1556 = vld [vmem:[%s1541 + $0x70] sm:$0xff]
    %v1557 = vld [vmem:[%s1541 + $0x78] sm:$0xff]
    %v1558 = vld [vmem:[%s1541 + $0x80] sm:$0xff]
    %v1559 = vld [vmem:[%s1541 + $0x88] sm:$0xff]
    %v1560 = vld [vmem:[%s1541 + $0x90] sm:$0xff]
    %v1561 = vld [vmem:[%s1541 + $0x98] sm:$0xff]
    %v1562 = vld [vmem:[%s1541 + $0xa0] sm:$0xff]
    %v1563 = vld [vmem:[%s1541 + $0xa8] sm:$0xff]
    %v1564 = vld [vmem:[%s1541 + $0xb0] sm:$0xff]
    %v1565 = vld [vmem:[%s1541 + $0xb8] sm:$0xff]
    %v1566 = vld [vmem:[%s1541 + $0xc0] sm:$0xff]
    %v1567 = vld [vmem:[%s1541 + $0xc8] sm:$0xff]
    %v1568 = vld [vmem:[%s1541 + $0xd0] sm:$0xff]
    %v1569 = vld [vmem:[%s1541 + $0xd8] sm:$0xff]
    %v1570 = vld [vmem:[%s1541 + $0xe0] sm:$0xff]
    %v1571 = vld [vmem:[%s1541 + $0xe8] sm:$0xff]
    %v1572 = vld [vmem:[%s1541 + $0xf0] sm:$0xff]
    %v1573 = vld [vmem:[%s1541 + $0xf8] sm:$0xff]
    %v1574 = vld [vmem:[%s1541 + $0x100] sm:$0xff]
    %v1575 = vld [vmem:[%s1541 + $0x108] sm:$0xff]
    %v1576 = vld [vmem:[%s1541 + $0x110] sm:$0xff]
    %v1577 = vld [vmem:[%s1541 + $0x118] sm:$0xff]
    %v1578 = vld [vmem:[%s1541 + $0x120] sm:$0xff]
    %v1579 = vld [vmem:[%s1541 + $0x128] sm:$0xff]
    %v1580 = vld [vmem:[%s1541 + $0x130] sm:$0xff]
    %v1581 = vld [vmem:[%s1541 + $0x138] sm:$0xff]
    %v1582 = vld [vmem:[%s1541 + $0x140] sm:$0xff]
    %v1583 = vld [vmem:[%s1541 + $0x148] sm:$0xff]
    %v1584 = vld [vmem:[%s1541 + $0x150] sm:$0xff]
    %v1585 = vld [vmem:[%s1541 + $0x158] sm:$0xff]
    %v1586 = vld [vmem:[%s1541 + $0x160] sm:$0xff]
    %v1587 = vld [vmem:[%s1541 + $0x168] sm:$0xff]
    %v1588 = vld [vmem:[%s1541 + $0x170] sm:$0xff]
    %v1589 = vld [vmem:[%s1541 + $0x178] sm:$0xff]
    %v1590 = vld [vmem:[%s1541 + $0x180] sm:$0xff]
    %v1591 = vld [vmem:[%s1541 + $0x188] sm:$0xff]
    %v1592 = vld [vmem:[%s1541 + $0x190] sm:$0xff]
    %v1593 = vld [vmem:[%s1541 + $0x198] sm:$0xff]
    %v1594 = vld [vmem:[%s1541 + $0x1a0] sm:$0xff]
    %v1595 = vld [vmem:[%s1541 + $0x1a8] sm:$0xff]
    %v1596 = vld [vmem:[%s1541 + $0x1b0] sm:$0xff]
    %v1597 = vld [vmem:[%s1541 + $0x1b8] sm:$0xff]
    %v1598 = vld [vmem:[%s1541 + $0x1c0] sm:$0xff]
    %v1599 = vld [vmem:[%s1541 + $0x1c8] sm:$0xff]
    %v1600 = vld [vmem:[%s1541 + $0x1d0] sm:$0xff]
    %v1601 = vld [vmem:[%s1541 + $0x1d8] sm:$0xff]
    %v1602 = vld [vmem:[%s1541 + $0x1e0] sm:$0xff]
    %v1603 = vld [vmem:[%s1541 + $0x1e8] sm:$0xff]
    %v1604 = vld [vmem:[%s1541 + $0x1f0] sm:$0xff]
    %v1605 = vld [vmem:[%s1541 + $0x1f8] sm:$0xff]
    %1606 = vmatprep.subr.mxu0 %v1543
    %1607 = vmatpush1.msra.mxu0 %v1542
    %1608 = vmatprep.subr.mxu0 %v1545
    %1609 = vmatpush1.msra.mxu0 %v1544
    %1610 = vmatprep.subr.mxu0 %v1547
    %1611 = vmatpush1.msra.mxu0 %v1546
    %1612 = vmatprep.subr.mxu0 %v1549
    %1613 = vmatpush1.msra.mxu0 %v1548
    %1614 = vmatprep.subr.mxu0 %v1551
    %1615 = vmatpush1.msra.mxu0 %v1550
    %1616 = vmatprep.subr.mxu0 %v1553
    %1617 = vmatpush1.msra.mxu0 %v1552
    %1618 = vmatprep.subr.mxu0 %v1555
    %1619 = vmatpush1.msra.mxu0 %v1554
    %1620 = vmatprep.subr.mxu0 %v1557
    %1621 = vmatpush1.msra.mxu0 %v1556
    %1622 = vmatprep.subr.mxu0 %v1559
    %1623 = vmatpush1.msra.mxu0 %v1558
    %1624 = vmatprep.subr.mxu0 %v1561
    %1625 = vmatpush1.msra.mxu0 %v1560
    %1626 = vmatprep.subr.mxu0 %v1563
    %1627 = vmatpush1.msra.mxu0 %v1562
    %1628 = vmatprep.subr.mxu0 %v1565
    %1629 = vmatpush1.msra.mxu0 %v1564
    %1630 = vmatprep.subr.mxu0 %v1567
    %1631 = vmatpush1.msra.mxu0 %v1566
    %1632 = vmatprep.subr.mxu0 %v1569
    %1633 = vmatpush1.msra.mxu0 %v1568
    %1634 = vmatprep.subr.mxu0 %v1571
    %1635 = vmatpush1.msra.mxu0 %v1570
    %1636 = vmatprep.subr.mxu0 %v1573
    %1637 = vmatpush1.msra.mxu0 %v1572
    %1638 = vmatprep.subr.mxu0 %v1575
    %1639 = vmatpush1.msra.mxu0 %v1574
    %1640 = vmatprep.subr.mxu0 %v1577
    %1641 = vmatpush1.msra.mxu0 %v1576
    %1642 = vmatprep.subr.mxu0 %v1579
    %1643 = vmatpush1.msra.mxu0 %v1578
    %1644 = vmatprep.subr.mxu0 %v1581
    %1645 = vmatpush1.msra.mxu0 %v1580
    %1646 = vmatprep.subr.mxu0 %v1583
    %1647 = vmatpush1.msra.mxu0 %v1582
    %1648 = vmatprep.subr.mxu0 %v1585
    %1649 = vmatpush1.msra.mxu0 %v1584
    %1650 = vmatprep.subr.mxu0 %v1587
    %1651 = vmatpush1.msra.mxu0 %v1586
    %1652 = vmatprep.subr.mxu0 %v1589
    %1653 = vmatpush1.msra.mxu0 %v1588
    %1654 = vmatprep.subr.mxu0 %v1591
    %1655 = vmatpush1.msra.mxu0 %v1590
    %1656 = vmatprep.subr.mxu0 %v1593
    %1657 = vmatpush1.msra.mxu0 %v1592
    %1658 = vmatprep.subr.mxu0 %v1595
    %1659 = vmatpush1.msra.mxu0 %v1594
    %1660 = vmatprep.subr.mxu0 %v1597
    %1661 = vmatpush1.msra.mxu0 %v1596
    %1662 = vmatprep.subr.mxu0 %v1599
    %1663 = vmatpush1.msra.mxu0 %v1598
    %1664 = vmatprep.subr.mxu0 %v1601
    %1665 = vmatpush1.msra.mxu0 %v1600
    %1666 = vmatprep.subr.mxu0 %v1603
    %1667 = vmatpush1.msra.mxu0 %v1602
    %1668 = vmatprep.subr.mxu0 %v1605
    %1669 = vmatpush1.msra.mxu0 %v1604
    %1670 = vmatprep.mubr.f32.mxu0 %v1539
    %1671 = vmatmul.mubr.f32.gmra.mrb[0].mxu0 %v1537
    %v1672 = vpop.f32.mrb[0].mxu0
    %v1673 = vadd.f32 0.0, %v1672
    %v1674 = vpop.f32.mrb[0].mxu0
    %v1675 = vadd.f32 0.0, %v1674
    %1676 = vdwg.mxu0
    %1677 = vmatprep.subr.mxu0 %v1402
    %1678 = vmatpush1.msra.mxu0 %v1401
    %1679 = vmatprep.subr.mxu0 %v1404
    %1680 = vmatpush1.msra.mxu0 %v1403
    %1681 = vmatprep.subr.mxu0 %v1406
    %1682 = vmatpush1.msra.mxu0 %v1405
    %1683 = vmatprep.subr.mxu0 %v1408
    %1684 = vmatpush1.msra.mxu0 %v1407
    %1685 = vmatprep.subr.mxu0 %v1410
    %1686 = vmatpush1.msra.mxu0 %v1409
    %1687 = vmatprep.subr.mxu0 %v1412
    %1688 = vmatpush1.msra.mxu0 %v1411
    %1689 = vmatprep.subr.mxu0 %v1414
    %1690 = vmatpush1.msra.mxu0 %v1413
    %1691 = vmatprep.subr.mxu0 %v1416
    %1692 = vmatpush1.msra.mxu0 %v1415
    %1693 = vmatprep.subr.mxu0 %v1418
    %1694 = vmatpush1.msra.mxu0 %v1417
    %1695 = vmatprep.subr.mxu0 %v1420
    %1696 = vmatpush1.msra.mxu0 %v1419
    %1697 = vmatprep.subr.mxu0 %v1422
    %1698 = vmatpush1.msra.mxu0 %v1421
    %1699 = vmatprep.subr.mxu0 %v1424
    %1700 = vmatpush1.msra.mxu0 %v1423
    %1701 = vmatprep.subr.mxu0 %v1426
    %1702 = vmatpush1.msra.mxu0 %v1425
    %1703 = vmatprep.subr.mxu0 %v1428
    %1704 = vmatpush1.msra.mxu0 %v1427
    %1705 = vmatprep.subr.mxu0 %v1430
    %1706 = vmatpush1.msra.mxu0 %v1429
    %1707 = vmatprep.subr.mxu0 %v1432
    %1708 = vmatpush1.msra.mxu0 %v1431
    %1709 = vmatprep.subr.mxu0 %v1434
    %1710 = vmatpush1.msra.mxu0 %v1433
    %1711 = vmatprep.subr.mxu0 %v1436
    %1712 = vmatpush1.msra.mxu0 %v1435
    %1713 = vmatprep.subr.mxu0 %v1438
    %1714 = vmatpush1.msra.mxu0 %v1437
    %1715 = vmatprep.subr.mxu0 %v1440
    %1716 = vmatpush1.msra.mxu0 %v1439
    %1717 = vmatprep.subr.mxu0 %v1442
    %1718 = vmatpush1.msra.mxu0 %v1441
    %1719 = vmatprep.subr.mxu0 %v1444
    %1720 = vmatpush1.msra.mxu0 %v1443
    %1721 = vmatprep.subr.mxu0 %v1446
    %1722 = vmatpush1.msra.mxu0 %v1445
    %1723 = vmatprep.subr.mxu0 %v1448
    %1724 = vmatpush1.msra.mxu0 %v1447
    %1725 = vmatprep.subr.mxu0 %v1450
    %1726 = vmatpush1.msra.mxu0 %v1449
    %1727 = vmatprep.subr.mxu0 %v1452
    %1728 = vmatpush1.msra.mxu0 %v1451
    %1729 = vmatprep.subr.mxu0 %v1454
    %1730 = vmatpush1.msra.mxu0 %v1453
    %1731 = vmatprep.subr.mxu0 %v1456
    %1732 = vmatpush1.msra.mxu0 %v1455
    %1733 = vmatprep.subr.mxu0 %v1458
    %1734 = vmatpush1.msra.mxu0 %v1457
    %1735 = vmatprep.subr.mxu0 %v1460
    %1736 = vmatpush1.msra.mxu0 %v1459
    %1737 = vmatprep.subr.mxu0 %v1462
    %1738 = vmatpush1.msra.mxu0 %v1461
    %1739 = vmatprep.subr.mxu0 %v1464
    %1740 = vmatpush1.msra.mxu0 %v1463
    %1741 = vmatprep.mubr.f32.mxu0 %v1399
    %1742 = vmatmul.mubr.f32.gmra.mrb[0].mxu0 %v1397
    %v1743 = vpop.f32.mrb[0].mxu0
    %v1744 = vadd.f32 %v1673, %v1743
    %v1745 = vpop.f32.mrb[0].mxu0
    %v1746 = vadd.f32 %v1675, %v1745
    %1747 = vdwg.mxu0
    %s1748 = scalar_lea.vmem [#allocation8], 8
    %v1749 = vld [vmem:[%s1748] sm:$0xf]
    %v1751 = vsel %vm1326, %v1749, 0
    %1753 = vmatprep.subr.mxu0 %v1324
    %1754 = vmatpush1.msra.mxu0 %v1323
    %1755 = vmatprep.subr.mxu0 0.0
    %1756 = vmatpush1.msra.mxu0 0.0
    %1757 = vmatprep.subr.mxu0 0.0
    %1758 = vmatpush1.msra.mxu0 0.0
    %1759 = vmatprep.subr.mxu0 0.0
    %1760 = vmatpush1.msra.mxu0 0.0
    %1761 = vmatprep.subr.mxu0 0.0
    %1762 = vmatpush1.msra.mxu0 0.0
    %1763 = vmatprep.subr.mxu0 0.0
    %1764 = vmatpush1.msra.mxu0 0.0
    %1765 = vmatprep.subr.mxu0 0.0
    %1766 = vmatpush1.msra.mxu0 0.0
    %1767 = vmatprep.subr.mxu0 0.0
    %1768 = vmatpush1.msra.mxu0 0.0
    %1769 = vmatprep.subr.mxu0 0.0
    %1770 = vmatpush1.msra.mxu0 0.0
    %1771 = vmatprep.subr.mxu0 0.0
    %1772 = vmatpush1.msra.mxu0 0.0
    %1773 = vmatprep.subr.mxu0 0.0
    %1774 = vmatpush1.msra.mxu0 0.0
    %1775 = vmatprep.subr.mxu0 0.0
    %1776 = vmatpush1.msra.mxu0 0.0
    %1777 = vmatprep.subr.mxu0 0.0
    %1778 = vmatpush1.msra.mxu0 0.0
    %1779 = vmatprep.subr.mxu0 0.0
    %1780 = vmatpush1.msra.mxu0 0.0
    %1781 = vmatprep.subr.mxu0 0.0
    %1782 = vmatpush1.msra.mxu0 0.0
    %1783 = vmatprep.subr.mxu0 0.0
    %1784 = vmatpush1.msra.mxu0 0.0
    %1785 = vmatprep.subr.mxu0 0.0
    %1786 = vmatpush1.msra.mxu0 0.0
    %1787 = vmatprep.subr.mxu0 0.0
    %1788 = vmatpush1.msra.mxu0 0.0
    %1789 = vmatprep.subr.mxu0 0.0
    %1790 = vmatpush1.msra.mxu0 0.0
    %1791 = vmatprep.subr.mxu0 0.0
    %1792 = vmatpush1.msra.mxu0 0.0
    %1793 = vmatprep.subr.mxu0 0.0
    %1794 = vmatpush1.msra.mxu0 0.0
    %1795 = vmatprep.subr.mxu0 0.0
    %1796 = vmatpush1.msra.mxu0 0.0
    %1797 = vmatprep.subr.mxu0 0.0
    %1798 = vmatpush1.msra.mxu0 0.0
    %1799 = vmatprep.subr.mxu0 0.0
    %1800 = vmatpush1.msra.mxu0 0.0
    %1801 = vmatprep.subr.mxu0 0.0
    %1802 = vmatpush1.msra.mxu0 0.0
    %1803 = vmatprep.subr.mxu0 0.0
    %1804 = vmatpush1.msra.mxu0 0.0
    %1805 = vmatprep.subr.mxu0 0.0
    %1806 = vmatpush1.msra.mxu0 0.0
    %1807 = vmatprep.subr.mxu0 0.0
    %1808 = vmatpush1.msra.mxu0 0.0
    %1809 = vmatprep.subr.mxu0 0.0
    %1810 = vmatpush1.msra.mxu0 0.0
    %1811 = vmatprep.subr.mxu0 0.0
    %1812 = vmatpush1.msra.mxu0 0.0
    %1813 = vmatprep.subr.mxu0 0.0
    %1814 = vmatpush1.msra.mxu0 0.0
    %1815 = vmatprep.subr.mxu0 0.0
    %1816 = vmatpush1.msra.mxu0 0.0
    %1817 = vmatprep.mubr.f32.mxu0 0.0
    %1818 = vmatmul.mubr.f32.gmra.mrb[0].mxu0 %v1751
    %v1819 = vpop.f32.mrb[0].mxu0
    %v1820 = vadd.f32 0.0, %v1819
    %v1821 = vpop.f32.mrb[0].mxu0
    %v1822 = vadd.f32 0.0, %v1821
    %1823 = vdwg.mxu0
    %s1824 = scalar_lea.vmem [#allocation10], 1024
    %v1825 = vld [vmem:[%s1824] sm:$0xff]
    %v1826 = vld [vmem:[%s1824 + $0x8] sm:$0xff]
    %v1827 = vld [vmem:[%s1824 + $0x10] sm:$0xff]
    %v1828 = vld [vmem:[%s1824 + $0x18] sm:$0xff]
    %v1829 = vld [vmem:[%s1824 + $0x20] sm:$0xff]
    %v1830 = vld [vmem:[%s1824 + $0x28] sm:$0xff]
    %v1831 = vld [vmem:[%s1824 + $0x30] sm:$0xff]
    %v1832 = vld [vmem:[%s1824 + $0x38] sm:$0xff]
    %v1833 = vld [vmem:[%s1824 + $0x40] sm:$0xff]
    %v1834 = vld [vmem:[%s1824 + $0x48] sm:$0xff]
    %v1835 = vld [vmem:[%s1824 + $0x50] sm:$0xff]
    %v1836 = vld [vmem:[%s1824 + $0x58] sm:$0xff]
    %v1837 = vld [vmem:[%s1824 + $0x60] sm:$0xff]
    %v1838 = vld [vmem:[%s1824 + $0x68] sm:$0xff]
    %v1839 = vld [vmem:[%s1824 + $0x70] sm:$0xff]
    %v1840 = vld [vmem:[%s1824 + $0x78] sm:$0xff]
    %v1841 = vld [vmem:[%s1824 + $0x80] sm:$0xff]
    %v1842 = vld [vmem:[%s1824 + $0x88] sm:$0xff]
    %v1843 = vld [vmem:[%s1824 + $0x90] sm:$0xff]
    %v1844 = vld [vmem:[%s1824 + $0x98] sm:$0xff]
    %v1845 = vld [vmem:[%s1824 + $0xa0] sm:$0xff]
    %v1846 = vld [vmem:[%s1824 + $0xa8] sm:$0xff]
    %v1847 = vld [vmem:[%s1824 + $0xb0] sm:$0xff]
    %v1848 = vld [vmem:[%s1824 + $0xb8] sm:$0xff]
    %v1849 = vld [vmem:[%s1824 + $0xc0] sm:$0xff]
    %v1850 = vld [vmem:[%s1824 + $0xc8] sm:$0xff]
    %v1851 = vld [vmem:[%s1824 + $0xd0] sm:$0xff]
    %v1852 = vld [vmem:[%s1824 + $0xd8] sm:$0xff]
    %v1853 = vld [vmem:[%s1824 + $0xe0] sm:$0xff]
    %v1854 = vld [vmem:[%s1824 + $0xe8] sm:$0xff]
    %v1855 = vld [vmem:[%s1824 + $0xf0] sm:$0xff]
    %v1856 = vld [vmem:[%s1824 + $0xf8] sm:$0xff]
    %v1857 = vld [vmem:[%s1824 + $0x100] sm:$0xff]
    %v1858 = vld [vmem:[%s1824 + $0x108] sm:$0xff]
    %v1859 = vld [vmem:[%s1824 + $0x110] sm:$0xff]
    %v1860 = vld [vmem:[%s1824 + $0x118] sm:$0xff]
    %v1861 = vld [vmem:[%s1824 + $0x120] sm:$0xff]
    %v1862 = vld [vmem:[%s1824 + $0x128] sm:$0xff]
    %v1863 = vld [vmem:[%s1824 + $0x130] sm:$0xff]
    %v1864 = vld [vmem:[%s1824 + $0x138] sm:$0xff]
    %v1865 = vld [vmem:[%s1824 + $0x140] sm:$0xff]
    %v1866 = vld [vmem:[%s1824 + $0x148] sm:$0xff]
    %v1867 = vld [vmem:[%s1824 + $0x150] sm:$0xff]
    %v1868 = vld [vmem:[%s1824 + $0x158] sm:$0xff]
    %v1869 = vld [vmem:[%s1824 + $0x160] sm:$0xff]
    %v1870 = vld [vmem:[%s1824 + $0x168] sm:$0xff]
    %v1871 = vld [vmem:[%s1824 + $0x170] sm:$0xff]
    %v1872 = vld [vmem:[%s1824 + $0x178] sm:$0xff]
    %v1873 = vld [vmem:[%s1824 + $0x180] sm:$0xff]
    %v1874 = vld [vmem:[%s1824 + $0x188] sm:$0xff]
    %v1875 = vld [vmem:[%s1824 + $0x190] sm:$0xff]
    %v1876 = vld [vmem:[%s1824 + $0x198] sm:$0xff]
    %v1877 = vld [vmem:[%s1824 + $0x1a0] sm:$0xff]
    %v1878 = vld [vmem:[%s1824 + $0x1a8] sm:$0xff]
    %v1879 = vld [vmem:[%s1824 + $0x1b0] sm:$0xff]
    %v1880 = vld [vmem:[%s1824 + $0x1b8] sm:$0xff]
    %v1881 = vld [vmem:[%s1824 + $0x1c0] sm:$0xff]
    %v1882 = vld [vmem:[%s1824 + $0x1c8] sm:$0xff]
    %v1883 = vld [vmem:[%s1824 + $0x1d0] sm:$0xff]
    %v1884 = vld [vmem:[%s1824 + $0x1d8] sm:$0xff]
    %v1885 = vld [vmem:[%s1824 + $0x1e0] sm:$0xff]
    %v1886 = vld [vmem:[%s1824 + $0x1e8] sm:$0xff]
    %v1887 = vld [vmem:[%s1824 + $0x1f0] sm:$0xff]
    %v1888 = vld [vmem:[%s1824 + $0x1f8] sm:$0xff]
    %1889 = vmatprep.subr.mxu0 %v1826
    %1890 = vmatpush1.msra.mxu0 %v1825
    %1891 = vmatprep.subr.mxu0 %v1828
    %1892 = vmatpush1.msra.mxu0 %v1827
    %1893 = vmatprep.subr.mxu0 %v1830
    %1894 = vmatpush1.msra.mxu0 %v1829
    %1895 = vmatprep.subr.mxu0 %v1832
    %1896 = vmatpush1.msra.mxu0 %v1831
    %1897 = vmatprep.subr.mxu0 %v1834
    %1898 = vmatpush1.msra.mxu0 %v1833
    %1899 = vmatprep.subr.mxu0 %v1836
    %1900 = vmatpush1.msra.mxu0 %v1835
    %1901 = vmatprep.subr.mxu0 %v1838
    %1902 = vmatpush1.msra.mxu0 %v1837
    %1903 = vmatprep.subr.mxu0 %v1840
    %1904 = vmatpush1.msra.mxu0 %v1839
    %1905 = vmatprep.subr.mxu0 %v1842
    %1906 = vmatpush1.msra.mxu0 %v1841
    %1907 = vmatprep.subr.mxu0 %v1844
    %1908 = vmatpush1.msra.mxu0 %v1843
    %1909 = vmatprep.subr.mxu0 %v1846
    %1910 = vmatpush1.msra.mxu0 %v1845
    %1911 = vmatprep.subr.mxu0 %v1848
    %1912 = vmatpush1.msra.mxu0 %v1847
    %1913 = vmatprep.subr.mxu0 %v1850
    %1914 = vmatpush1.msra.mxu0 %v1849
    %1915 = vmatprep.subr.mxu0 %v1852
    %1916 = vmatpush1.msra.mxu0 %v1851
    %1917 = vmatprep.subr.mxu0 %v1854
    %1918 = vmatpush1.msra.mxu0 %v1853
    %1919 = vmatprep.subr.mxu0 %v1856
    %1920 = vmatpush1.msra.mxu0 %v1855
    %1921 = vmatprep.subr.mxu0 %v1858
    %1922 = vmatpush1.msra.mxu0 %v1857
    %1923 = vmatprep.subr.mxu0 %v1860
    %1924 = vmatpush1.msra.mxu0 %v1859
    %1925 = vmatprep.subr.mxu0 %v1862
    %1926 = vmatpush1.msra.mxu0 %v1861
    %1927 = vmatprep.subr.mxu0 %v1864
    %1928 = vmatpush1.msra.mxu0 %v1863
    %1929 = vmatprep.subr.mxu0 %v1866
    %1930 = vmatpush1.msra.mxu0 %v1865
    %1931 = vmatprep.subr.mxu0 %v1868
    %1932 = vmatpush1.msra.mxu0 %v1867
    %1933 = vmatprep.subr.mxu0 %v1870
    %1934 = vmatpush1.msra.mxu0 %v1869
    %1935 = vmatprep.subr.mxu0 %v1872
    %1936 = vmatpush1.msra.mxu0 %v1871
    %1937 = vmatprep.subr.mxu0 %v1874
    %1938 = vmatpush1.msra.mxu0 %v1873
    %1939 = vmatprep.subr.mxu0 %v1876
    %1940 = vmatpush1.msra.mxu0 %v1875
    %1941 = vmatprep.subr.mxu0 %v1878
    %1942 = vmatpush1.msra.mxu0 %v1877
    %1943 = vmatprep.subr.mxu0 %v1880
    %1944 = vmatpush1.msra.mxu0 %v1879
    %1945 = vmatprep.subr.mxu0 %v1882
    %1946 = vmatpush1.msra.mxu0 %v1881
    %1947 = vmatprep.subr.mxu0 %v1884
    %1948 = vmatpush1.msra.mxu0 %v1883
    %1949 = vmatprep.subr.mxu0 %v1886
    %1950 = vmatpush1.msra.mxu0 %v1885
    %1951 = vmatprep.subr.mxu0 %v1888
    %1952 = vmatpush1.msra.mxu0 %v1887
    %1953 = vmatprep.mubr.f32.mxu0 %v1822
    %1954 = vmatmul.mubr.f32.gmra.mrb[0].mxu0 %v1820
    %v1955 = vpop.f32.mrb[0].mxu0
    %v1956 = vadd.f32 0.0, %v1955
    %v1957 = vpop.f32.mrb[0].mxu0
    %v1958 = vadd.f32 0.0, %v1957
    %1959 = vdwg.mxu0
    %v1960 = vadd.f32 %v1744, %v1956
    %v1961 = vadd.f32 %v1746, %v1958
    %v1962 = vlaneseq
    %v1963 = vshrl.u32 %v1962, 7
    %v1964 = vsub.s32 3, %v1963
    %v1965 = vrot.slane %v109, %v1964
    %v1966 = vlaneseq
    %v1967 = vshrl.u32 %v1966, 7
    %v1968 = vsub.s32 3, %v1967
    %v1969 = vrot.slane %v110, %v1968
    %v1970 = vadd.f32 %v1960, %v1965
    %v1971 = vadd.f32 %v1961, %v1969
    %vm1972 = vcmask 1043456
    %v1973 = vsel %vm1972, %v1970, 0.0
    %v1974 = vrot.slane %v1973, 4
    %v1975 = vadd.f32 %v1973, %v1974
    %v1976 = vrot.slane %v1975, 2
    %v1977 = vadd.f32 %v1975, %v1976
    %v1978 = vrot.slane %v1977, 1
    %v1979 = vadd.f32 %v1977, %v1978
    %v1980 = vsel %vm1972, %v1971, 0.0
    %v1981 = vrot.slane %v1980, 4
    %v1982 = vadd.f32 %v1980, %v1981
    %v1983 = vrot.slane %v1982, 2
    %v1984 = vadd.f32 %v1982, %v1983
    %v1985 = vrot.slane %v1984, 1
    %v1986 = vadd.f32 %v1984, %v1985
    %1987 = vmatprep.subr.mxu0 %v114
    %1988 = vmatpush1.msra.mxu0 %v113
    %1989 = vmatprep.subr.mxu0 %v116
    %1990 = vmatpush1.msra.mxu0 %v115
    %1991 = vmatprep.subr.mxu0 %v118
    %1992 = vmatpush1.msra.mxu0 %v117
    %1993 = vmatprep.subr.mxu0 %v120
    %1994 = vmatpush1.msra.mxu0 %v119
    %1995 = vmatprep.subr.mxu0 %v122
    %1996 = vmatpush1.msra.mxu0 %v121
    %1997 = vmatprep.subr.mxu0 %v124
    %1998 = vmatpush1.msra.mxu0 %v123
    %1999 = vmatprep.subr.mxu0 %v126
    %2000 = vmatpush1.msra.mxu0 %v125
    %2001 = vmatprep.subr.mxu0 %v128
    %2002 = vmatpush1.msra.mxu0 %v127
    %2003 = vmatprep.subr.mxu0 %v130
    %2004 = vmatpush1.msra.mxu0 %v129
    %2005 = vmatprep.subr.mxu0 %v132
    %2006 = vmatpush1.msra.mxu0 %v131
    %2007 = vmatprep.subr.mxu0 %v134
    %2008 = vmatpush1.msra.mxu0 %v133
    %2009 = vmatprep.subr.mxu0 %v136
    %2010 = vmatpush1.msra.mxu0 %v135
    %2011 = vmatprep.subr.mxu0 %v138
    %2012 = vmatpush1.msra.mxu0 %v137
    %2013 = vmatprep.subr.mxu0 %v140
    %2014 = vmatpush1.msra.mxu0 %v139
    %2015 = vmatprep.subr.mxu0 %v142
    %2016 = vmatpush1.msra.mxu0 %v141
    %2017 = vmatprep.subr.mxu0 %v144
    %2018 = vmatpush1.msra.mxu0 %v143
    %2019 = vmatprep.subr.mxu0 %v146
    %2020 = vmatpush1.msra.mxu0 %v145
    %2021 = vmatprep.subr.mxu0 %v148
    %2022 = vmatpush1.msra.mxu0 %v147
    %2023 = vmatprep.subr.mxu0 %v150
    %2024 = vmatpush1.msra.mxu0 %v149
    %2025 = vmatprep.subr.mxu0 %v152
    %2026 = vmatpush1.msra.mxu0 %v151
    %2027 = vmatprep.subr.mxu0 %v154
    %2028 = vmatpush1.msra.mxu0 %v153
    %2029 = vmatprep.subr.mxu0 %v156
    %2030 = vmatpush1.msra.mxu0 %v155
    %2031 = vmatprep.subr.mxu0 %v158
    %2032 = vmatpush1.msra.mxu0 %v157
    %2033 = vmatprep.subr.mxu0 %v160
    %2034 = vmatpush1.msra.mxu0 %v159
    %2035 = vmatprep.subr.mxu0 %v162
    %2036 = vmatpush1.msra.mxu0 %v161
    %2037 = vmatprep.subr.mxu0 %v164
    %2038 = vmatpush1.msra.mxu0 %v163
    %2039 = vmatprep.subr.mxu0 %v166
    %2040 = vmatpush1.msra.mxu0 %v165
    %2041 = vmatprep.subr.mxu0 %v168
    %2042 = vmatpush1.msra.mxu0 %v167
    %2043 = vmatprep.subr.mxu0 %v170
    %2044 = vmatpush1.msra.mxu0 %v169
    %2045 = vmatprep.subr.mxu0 %v172
    %2046 = vmatpush1.msra.mxu0 %v171
    %2047 = vmatprep.subr.mxu0 %v174
    %2048 = vmatpush1.msra.mxu0 %v173
    %2049 = vmatprep.subr.mxu0 %v176
    %2050 = vmatpush1.msra.mxu0 %v175
    %2051 = vmatprep.mubr.f32.mxu0 %v1986
    %2052 = vmatmul.mubr.f32.gmra.mrb[0].mxu0 %v1979
    %v2053 = vpop.f32.mrb[0].mxu0
    %v2054 = vadd.f32 0.0, %v2053
    %v2055 = vpop.f32.mrb[0].mxu0
    %v2056 = vadd.f32 0.0, %v2055
    %2057 = vdwg.mxu0
    %v2058 = vmul.f32 %v2054, 0.125
    %v2059 = vmul.f32 %v2056, 0.125
    %v2060 = vlaneseq
    %v2061 = vshrl.u32 %v2060, 7
    %v2062 = vsub.s32 0, %v2061
    %v2063 = vrot.slane %v2058, %v2062
    %v2064 = vlaneseq
    %v2065 = vshrl.u32 %v2064, 7
    %v2066 = vsub.s32 0, %v2065
    %v2067 = vrot.slane %v2059, %v2066
    %v2068 = vsub.f32 %v1970, %v2063
    %v2069 = vsub.f32 %v1971, %v2067
    %v2070 = vmul.f32 %v2068, %v2068
    %v2071 = vmul.f32 %v2069, %v2069
    %v2072 = vsel %vm1972, %v2070, 0.0
    %v2073 = vrot.slane %v2072, 4
    %v2074 = vadd.f32 %v2072, %v2073
    %v2075 = vrot.slane %v2074, 2
    %v2076 = vadd.f32 %v2074, %v2075
    %v2077 = vrot.slane %v2076, 1
    %v2078 = vadd.f32 %v2076, %v2077
    %v2079 = vsel %vm1972, %v2071, 0.0
    %v2080 = vrot.slane %v2079, 4
    %v2081 = vadd.f32 %v2079, %v2080
    %v2082 = vrot.slane %v2081, 2
    %v2083 = vadd.f32 %v2081, %v2082
    %v2084 = vrot.slane %v2083, 1
    %v2085 = vadd.f32 %v2083, %v2084
    %2086 = vmatprep.subr.mxu0 %v114
    %2087 = vmatpush1.msra.mxu0 %v113
    %2088 = vmatprep.subr.mxu0 %v116
    %2089 = vmatpush1.msra.mxu0 %v115
    %2090 = vmatprep.subr.mxu0 %v118
    %2091 = vmatpush1.msra.mxu0 %v117
    %2092 = vmatprep.subr.mxu0 %v120
    %2093 = vmatpush1.msra.mxu0 %v119
    %2094 = vmatprep.subr.mxu0 %v122
    %2095 = vmatpush1.msra.mxu0 %v121
    %2096 = vmatprep.subr.mxu0 %v124
    %2097 = vmatpush1.msra.mxu0 %v123
    %2098 = vmatprep.subr.mxu0 %v126
    %2099 = vmatpush1.msra.mxu0 %v125
    %2100 = vmatprep.subr.mxu0 %v128
    %2101 = vmatpush1.msra.mxu0 %v127
    %2102 = vmatprep.subr.mxu0 %v130
    %2103 = vmatpush1.msra.mxu0 %v129
    %2104 = vmatprep.subr.mxu0 %v132
    %2105 = vmatpush1.msra.mxu0 %v131
    %2106 = vmatprep.subr.mxu0 %v134
    %2107 = vmatpush1.msra.mxu0 %v133
    %2108 = vmatprep.subr.mxu0 %v136
    %2109 = vmatpush1.msra.mxu0 %v135
    %2110 = vmatprep.subr.mxu0 %v138
    %2111 = vmatpush1.msra.mxu0 %v137
    %2112 = vmatprep.subr.mxu0 %v140
    %2113 = vmatpush1.msra.mxu0 %v139
    %2114 = vmatprep.subr.mxu0 %v142
    %2115 = vmatpush1.msra.mxu0 %v141
    %2116 = vmatprep.subr.mxu0 %v144
    %2117 = vmatpush1.msra.mxu0 %v143
    %2118 = vmatprep.subr.mxu0 %v146
    %2119 = vmatpush1.msra.mxu0 %v145
    %2120 = vmatprep.subr.mxu0 %v148
    %2121 = vmatpush1.msra.mxu0 %v147
    %2122 = vmatprep.subr.mxu0 %v150
    %2123 = vmatpush1.msra.mxu0 %v149
    %2124 = vmatprep.subr.mxu0 %v152
    %2125 = vmatpush1.msra.mxu0 %v151
    %2126 = vmatprep.subr.mxu0 %v154
    %2127 = vmatpush1.msra.mxu0 %v153
    %2128 = vmatprep.subr.mxu0 %v156
    %2129 = vmatpush1.msra.mxu0 %v155
    %2130 = vmatprep.subr.mxu0 %v158
    %2131 = vmatpush1.msra.mxu0 %v157
    %2132 = vmatprep.subr.mxu0 %v160
    %2133 = vmatpush1.msra.mxu0 %v159
    %2134 = vmatprep.subr.mxu0 %v162
    %2135 = vmatpush1.msra.mxu0 %v161
    %2136 = vmatprep.subr.mxu0 %v164
    %2137 = vmatpush1.msra.mxu0 %v163
    %2138 = vmatprep.subr.mxu0 %v166
    %2139 = vmatpush1.msra.mxu0 %v165
    %2140 = vmatprep.subr.mxu0 %v168
    %2141 = vmatpush1.msra.mxu0 %v167
    %2142 = vmatprep.subr.mxu0 %v170
    %2143 = vmatpush1.msra.mxu0 %v169
    %2144 = vmatprep.subr.mxu0 %v172
    %2145 = vmatpush1.msra.mxu0 %v171
    %2146 = vmatprep.subr.mxu0 %v174
    %2147 = vmatpush1.msra.mxu0 %v173
    %2148 = vmatprep.subr.mxu0 %v176
    %2149 = vmatpush1.msra.mxu0 %v175
    %2150 = vmatprep.mubr.f32.mxu0 %v2085
    %2151 = vmatmul.mubr.f32.gmra.mrb[0].mxu0 %v2078
    %v2152 = vpop.f32.mrb[0].mxu0
    %v2153 = vadd.f32 0.0, %v2152
    %v2154 = vpop.f32.mrb[0].mxu0
    %v2155 = vadd.f32 0.0, %v2154
    %2156 = vdwg.mxu0
    %v2157 = vmul.f32 %v2153, 0.125
    %v2158 = vmul.f32 %v2155, 0.125
    %v2159 = vadd.f32 %v2157, 1e-05
    %v2160 = vadd.f32 %v2158, 1e-05
    %v2161 = vrsqrt.pop %v2159
    %v2162 = vrsqrt.pop %v2160
    %v2163 = vlaneseq
    %v2164 = vshrl.u32 %v2163, 7
    %v2165 = vsub.s32 0, %v2164
    %v2166 = vrot.slane %v2161, %v2165
    %v2167 = vlaneseq
    %v2168 = vshrl.u32 %v2167, 7
    %v2169 = vsub.s32 0, %v2168
    %v2170 = vrot.slane %v2162, %v2169
    %v2171 = vmul.f32 %v2068, %v2166
    %v2172 = vmul.f32 %v2069, %v2170
    %v2173 = vlaneseq
    %v2174 = vshrl.u32 %v2173, 7
    %v2175 = vsub.s32 4, %v2174
    %v2176 = vrot.slane %v109, %v2175
    %v2177 = vlaneseq
    %v2178 = vshrl.u32 %v2177, 7
    %v2179 = vsub.s32 4, %v2178
    %v2180 = vrot.slane %v110, %v2179
    %v2181 = vmul.f32 %v2171, %v2176
    %v2182 = vmul.f32 %v2172, %v2180
    %v2183 = vlaneseq
    %v2184 = vshrl.u32 %v2183, 7
    %v2185 = vsub.s32 5, %v2184
    %v2186 = vrot.slane %v109, %v2185
    %v2187 = vlaneseq
    %v2188 = vshrl.u32 %v2187, 7
    %v2189 = vsub.s32 5, %v2188
    %v2190 = vrot.slane %v110, %v2189
    %v2191 = vadd.f32 %v2181, %v2186
    %v2192 = vadd.f32 %v2182, %v2190
    %v2193 = vmin.f32 %v2191, 20.0
    %v2194 = vmin.f32 %v2192, 20.0
    %v2195 = vmul.f32 %v2193, 1.442695
    %v2196 = vpow.pop %v2195
    %v2197 = vmul.f32 %v2194, 1.442695
    %v2198 = vpow.pop %v2197
    %v2199 = vadd.f32 %v2196, 2.0
    %v2200 = vadd.f32 %v2198, 2.0
    %v2201 = vmul.f32 %v2196, %v2199
    %v2202 = vmul.f32 %v2198, %v2200
    %vm2203 = vcmp.gt.f32.partialorder %v2191, 20.0
    %vm2204 = vcmp.gt.f32.partialorder %v2192, 20.0
    %v2205 = vadd.f32 %v2201, 2.0
    %v2206 = vadd.f32 %v2202, 2.0
    %v2207 = vrcp.pop %v2205
    %v2208 = vmul.f32 %v2201, %v2207
    %v2209 = vrcp.pop %v2206
    %v2210 = vmul.f32 %v2202, %v2209
    %v2211 = vsel %vm2203, 1.0, %v2208
    %v2212 = vsel %vm2204, 1.0, %v2210
    %v2213 = vmul.f32 %v2191, %v2211
    %v2214 = vmul.f32 %v2192, %v2212
    %v2217 = vcombine.low %v2213, %v2214
    %2219 = vst [vmem:[#allocation13] sm:$0xff] %v2217
    // Predicated region
    $region54: #{tpu_custom_call.1} parent=1 // pred_check
      _
    $region55: #{tpu_custom_call.1} parent=1 // pred_check_branch
      %2221 = sbr.rel (0) target = $region57
    $region56: #{tpu_custom_call.1} parent=1 // pred_region
      %s2223 = ssub.s32 128, 128
      %2224 = vsyncadd [#allocation4], %s2223
      %s2226 = sshll.u32 [#allocation13], 4
      %s2227 = int_to_ptr.vmem [resolvable:$true] %s2226
      %2229 = dma.vmem_to_hbm [thread:$0]  %s2227, 128, %s7, [#allocation4]
    $region57: #{tpu_custom_call.1} parent=1 // pred_fallthru
      _
    // Predicated region
    $region58: #{tpu_custom_call.1} parent=1 // pred_check
      _
    $region59: #{tpu_custom_call.1} parent=1 // pred_check_branch
      %2231 = sbr.rel (0) target = $region61
    $region60: #{tpu_custom_call.1} parent=1 // pred_region
      %2232 = dma.done [#allocation4], 128
    $region61: #{tpu_custom_call.1} parent=1 // pred_fallthru
      _
    %2233 = vsyncpa [#allocation3], 1
    %2234 = vsyncpa [#allocation6], 1
    %2235 = vsyncpa [#allocation9], 1
    %2236 = vsyncpa [#allocation12], 1
    %2237 = vsyncpa [#allocation4], 1

</llo_original>
